<compile_context>
chip_gen: v7x
topology: tpu7x:2x2x1
jax: 0.10.0
libtpu: 0.0.40
codegen_flags: <defaults>
</compile_context>

<pallas_src>
import math

import jax
import jax.numpy as jnp
from jax.experimental import pallas as pl
from jax.experimental.pallas import tpu as pltpu


def _relevance_fused_kernel(text_ref, addmask_ref, facets_ref,
                            w1_ref, b1_ref, w2_ref, b2_ref, out_ref):
    """One grid step == one batch tile; all 12 facets fused.

    TextFacetMatching: masked scaled dot-product of every token vs every facet,
    softmax over the sequence, weighted token sum -> per-facet text rep.
    Then the 12 per-facet MLP heads (Linear -> ReLU -> Linear) as F-batched matmuls.
    """
    tb, S, D = text_ref.shape
    F = facets_ref.shape[0]

    text = text_ref[...]                                       # (tb, S, D) f32
    addmask = addmask_ref[...]                                 # (tb, 1, S) f32 (0 / -1e30)

    # --- attention scores for ALL facets at once (MXU, f32 accumulation) ---
    facets_b = jnp.broadcast_to(facets_ref[...][None, :, :], (tb, F, D))
    scores = jnp.einsum('bfd,bsd->bfs', facets_b, text,
                        preferred_element_type=jnp.float32)     # (tb, F, S)
    scores = scores * (1.0 / math.sqrt(D)) + addmask            # scale + additive mask

    # masked softmax over the sequence (lane) axis; reciprocal goes to the EUP slot
    m = jnp.max(scores, axis=-1, keepdims=True)
    p = jnp.exp(scores - m)
    denom = jnp.sum(p, axis=-1, keepdims=True)
    p = p * pl.reciprocal(denom, approx=True)                   # (tb, F, S)

    # --- facet-aware text reps, batched over the batch tile (MXU) ---
    rep = jnp.einsum('bfs,bsd->bfd', p, text,
                     preferred_element_type=jnp.float32)        # (tb, F, D)
    rep = jnp.transpose(rep, (1, 0, 2))                         # (F, tb, D)

    # --- 12 MLP heads as one F-batched matmul pair (dropout = identity in eval) ---
    h = jnp.einsum('fbd,fdh->fbh', rep, w1_ref[...],
                   preferred_element_type=jnp.float32) + b1_ref[...]
    h = jnp.maximum(h, 0.0)
    logits = jnp.einsum('fbh,fhc->fbc', h, w2_ref[...],
                        preferred_element_type=jnp.float32) + b2_ref[...]

    out_ref[...] = logits                                       # (F, tb, C), single store


def _pick_batch_tile(B):
    # Batch tile must be a multiple of 8 (sublane rule on the output block) or the
    # full batch. Cap the tile so double-buffered text tiles stay small at scale.
    for cand in (32, 16, 8):
        if B % cand == 0:
            return cand
    return B


def relevance_net_forward(text_embed, mask_text, concept_rep, params,
                          tree_structure, *, tile_b=None):
    """Pallas-backed RelevanceNet forward (concept_tree=False, mh_matching=False, eval)."""
    F = 12
    B, S, D = text_embed.shape

    # root_domain_rep_from_facet (tiny reductions; plain-JAX glue).
    facet_rep = concept_rep[:F]
    domain_rows, s = [], 0
    for n in tree_structure[2]:
        domain_rows.append(jnp.mean(facet_rep[s:s + n], axis=0))
        s += n
    domain_rep = jnp.stack(domain_rows, axis=0)                 # (5, D)
    root_rep = jnp.mean(domain_rep, axis=0, keepdims=True)      # (1, D)
    concept_all = jnp.concatenate([root_rep, domain_rep, concept_rep], axis=0)
    facets = concept_all[6:6 + F].astype(jnp.float32)           # (12, D) original facet reps

    w1 = params["w1"].astype(jnp.float32)                       # (F, D, H)
    b1 = params["b1"].astype(jnp.float32)                       # (F, H)
    w2 = params["w2"].astype(jnp.float32)                       # (F, H, C)
    b2 = params["b2"].astype(jnp.float32)                       # (F, C)
    H, C = w1.shape[-1], w2.shape[-1]

    # Additive mask computed once in the wrapper: 0 for tokens, -1e30 for padding.
    addmask = jnp.where(mask_text > 0, 0.0, -1e30).astype(jnp.float32)[:, None, :]

    b1_3 = b1.reshape(F, 1, H)
    b2_3 = b2.reshape(F, 1, C)

    if tile_b is None:
        tile_b = _pick_batch_tile(B)
    assert B % tile_b == 0 and (tile_b == B or tile_b % 8 == 0)
    grid = (B // tile_b,)

    flops = 4 * B * S * D * F + 2 * B * F * (D * H + H * C)
    transcendentals = B * F * S
    bytes_accessed = 4 * (B * S * D + B * S + F * D
                          + F * D * H + F * H + F * H * C + F * C + F * B * C)

    out = pl.pallas_call(
        _relevance_fused_kernel,
        out_shape=jax.ShapeDtypeStruct((F, B, C), jnp.float32),
        grid_spec=pltpu.PrefetchScalarGridSpec(
            num_scalar_prefetch=0,
            grid=grid,
            in_specs=[
                pl.BlockSpec((tile_b, S, D), lambda i: (i, 0, 0)),   # text tile
                pl.BlockSpec((tile_b, 1, S), lambda i: (i, 0, 0)),   # additive mask tile
                pl.BlockSpec((F, D), lambda i: (0, 0)),              # facet reps (shared)
                pl.BlockSpec((F, D, H), lambda i: (0, 0, 0)),        # MLP W1 (all heads)
                pl.BlockSpec((F, 1, H), lambda i: (0, 0, 0)),        # MLP b1
                pl.BlockSpec((F, H, C), lambda i: (0, 0, 0)),        # MLP W2
                pl.BlockSpec((F, 1, C), lambda i: (0, 0, 0)),        # MLP b2
            ],
            out_specs=pl.BlockSpec((F, tile_b, C), lambda i: (0, i, 0)),
        ),
        compiler_params=pltpu.CompilerParams(
            dimension_semantics=("parallel",)),
        cost_estimate=pl.CostEstimate(flops=flops,
                                      transcendentals=transcendentals,
                                      bytes_accessed=bytes_accessed),
    )(text_embed.astype(jnp.float32), addmask, facets, w1, b1_3, w2, b2_3)

    logits = jnp.transpose(out, (1, 2, 0))                      # (B, C, 12) == permute(1,2,0)
    return logits, []                                           # eval: empty cl_loss_list


if __name__ == "__main__":
    B, S, D, C, F = 2, 8, 32, 3, 12   # batch, seq, hidden, cls_num, num facets
    H = D                              # MLP hidden width
    N_CONCEPT = 12
    tree_structure = [None, None, [3, 3, 2, 2, 2]]   # 5 domains covering the 12 facets

    key = jax.random.PRNGKey(0)
    k = jax.random.split(key, 4)

    # TODO(synk): the pretrained HF AutoModel text encoder has no Pallas
    # equivalent; text_embed / concept_rep stand in for its outputs.
    text_embed = jax.random.normal(k[0], (B, S, D), jnp.float32)
    concept_rep = jax.random.normal(k[1], (N_CONCEPT, D), jnp.float32)
    mask_text = jnp.ones((B, S), jnp.float32).at[1, 6:].set(0.0)

    # Deterministic per-facet MLP parameters (12 heads).
    params = {
        "w1": 0.1 * jax.random.normal(k[2], (F, D, H), jnp.float32),
        "b1": jnp.zeros((F, H), jnp.float32),
        "w2": 0.1 * jax.random.normal(k[3], (F, H, C), jnp.float32),
        "b2": jnp.zeros((F, C), jnp.float32),
    }

    # TODO(synk): HieTree / Gate / TextFacetMatchingMH and the training-only
    # contrastive loss (cl) are skipped (concept_tree=False, mh_matching=False, eval).
    logits, cl_losses = relevance_net_forward(
        text_embed, mask_text, concept_rep, params, tree_structure)
    logits = jax.block_until_ready(logits)
    assert logits.shape == (B, C, F), logits.shape
    assert bool(jnp.all(jnp.isfinite(logits)))
    print("KERNEL_OK")
</pallas_src>

<mosaic_0001>
module attributes {stable_mosaic.version = 11 : i64} {
  func.func @_relevance_fused_kernel(%arg0: i32, %arg1: memref<2x8x32xf32, #tpu.memory_space<vmem>>, %arg2: memref<2x1x8xf32, #tpu.memory_space<vmem>>, %arg3: memref<12x32xf32, #tpu.memory_space<vmem>>, %arg4: memref<12x32x32xf32, #tpu.memory_space<vmem>>, %arg5: memref<12x1x32xf32, #tpu.memory_space<vmem>>, %arg6: memref<12x32x3xf32, #tpu.memory_space<vmem>>, %arg7: memref<12x1x3xf32, #tpu.memory_space<vmem>>, %arg8: memref<12x2x3xf32, #tpu.memory_space<vmem>>) attributes {dimension_semantics = [#tpu.dimension_semantics<parallel>], iteration_bounds = array<i64: 1>, scalar_prefetch = 0 : i64, scratch_operands = 0 : i64, tpu.core_type = #tpu.core_type<tc>, window_params = [{transform_indices = @transform_0, window_bounds = array<i64: 2, 8, 32>}, {transform_indices = @transform_1, window_bounds = array<i64: 2, 1, 8>}, {pipeline_mode = #tpu.pipeline_mode<synchronous>, transform_indices = @transform_2, window_bounds = array<i64: 12, 32>}, {pipeline_mode = #tpu.pipeline_mode<synchronous>, transform_indices = @transform_3, window_bounds = array<i64: 12, 32, 32>}, {pipeline_mode = #tpu.pipeline_mode<synchronous>, transform_indices = @transform_4, window_bounds = array<i64: 12, 1, 32>}, {pipeline_mode = #tpu.pipeline_mode<synchronous>, transform_indices = @transform_5, window_bounds = array<i64: 12, 32, 3>}, {pipeline_mode = #tpu.pipeline_mode<synchronous>, transform_indices = @transform_6, window_bounds = array<i64: 12, 1, 3>}, {transform_indices = @transform_7, window_bounds = array<i64: 12, 2, 3>}]} {
    %c0 = arith.constant 0 : index
    %c0_0 = arith.constant 0 : index
    %c0_1 = arith.constant 0 : index
    %0 = vector.load %arg1[%c0, %c0_0, %c0_1] : memref<2x8x32xf32, #tpu.memory_space<vmem>>, vector<2x8x32xf32>
    %c0_2 = arith.constant 0 : index
    %c0_3 = arith.constant 0 : index
    %c0_4 = arith.constant 0 : index
    %1 = vector.load %arg2[%c0_2, %c0_3, %c0_4] : memref<2x1x8xf32, #tpu.memory_space<vmem>>, vector<2x1x8xf32>
    %c0_5 = arith.constant 0 : index
    %c0_6 = arith.constant 0 : index
    %2 = vector.load %arg3[%c0_5, %c0_6] : memref<12x32xf32, #tpu.memory_space<vmem>>, vector<12x32xf32>
    %3 = vector.shape_cast %2 : vector<12x32xf32> to vector<1x12x32xf32>
    %4 = vector.shape_cast %3 : vector<1x12x32xf32> to vector<1x12x32xf32>
    %5 = vector.broadcast %4 : vector<1x12x32xf32> to vector<2x12x32xf32>
    "tpu.trace_start"() <{level = 10 : i32, message = "bfd,bsd->bfs"}> : () -> ()
    %cst = arith.constant dense<0.000000e+00> : vector<2x12x8xf32>
    %6 = tpu.matmul %5, %0, %cst {dimension_numbers = #tpu.dot_dimension_numbers<[2], [2], [1], [1], [0, 0, 0, 1, 1, 1], [0], [0]>} : vector<2x12x32xf32>, vector<2x8x32xf32>, vector<2x12x8xf32> -> vector<2x12x8xf32>
    "tpu.trace_stop"() : () -> ()
    %cst_7 = arith.constant 0.176776692 : f32
    %7 = vector.broadcast %cst_7 : f32 to vector<2x12x8xf32>
    %8 = arith.mulf %6, %7 : vector<2x12x8xf32>
    %9 = vector.broadcast %1 : vector<2x1x8xf32> to vector<2x12x8xf32>
    %10 = arith.addf %8, %9 : vector<2x12x8xf32>
    %cst_8 = arith.constant dense<0xFF800000> : vector<2x12xf32>
    %11 = vector.multi_reduction <maximumf>, %10, %cst_8 [2] : vector<2x12x8xf32> to vector<2x12xf32>
    %12 = vector.shape_cast %11 : vector<2x12xf32> to vector<2x12x1xf32>
    %13 = vector.broadcast %12 : vector<2x12x1xf32> to vector<2x12x8xf32>
    %14 = arith.subf %10, %13 : vector<2x12x8xf32>
    %15 = math.exp %14 : vector<2x12x8xf32>
    %cst_9 = arith.constant dense<0.000000e+00> : vector<2x12xf32>
    %16 = vector.multi_reduction <add>, %15, %cst_9 [2] : vector<2x12x8xf32> to vector<2x12xf32>
    %17 = vector.shape_cast %16 : vector<2x12xf32> to vector<2x12x1xf32>
    %18 = tpu.reciprocal %17 {approx = true} : vector<2x12x1xf32> -> vector<2x12x1xf32>
    %19 = vector.broadcast %18 : vector<2x12x1xf32> to vector<2x12x8xf32>
    %20 = arith.mulf %15, %19 : vector<2x12x8xf32>
    "tpu.trace_start"() <{level = 10 : i32, message = "bfs,bsd->bfd"}> : () -> ()
    %cst_10 = arith.constant dense<0.000000e+00> : vector<2x12x32xf32>
    %21 = tpu.matmul %20, %0, %cst_10 {dimension_numbers = #tpu.dot_dimension_numbers<[2], [1], [1], [2], [0, 0, 0, 1, 1, 2], [0], [0]>} : vector<2x12x8xf32>, vector<2x8x32xf32>, vector<2x12x32xf32> -> vector<2x12x32xf32>
    "tpu.trace_stop"() : () -> ()
    %22 = tpu.transpose %21, [1, 0, 2] : vector<2x12x32xf32> -> vector<12x2x32xf32>
    %c0_11 = arith.constant 0 : index
    %c0_12 = arith.constant 0 : index
    %c0_13 = arith.constant 0 : index
    %23 = vector.load %arg4[%c0_11, %c0_12, %c0_13] : memref<12x32x32xf32, #tpu.memory_space<vmem>>, vector<12x32x32xf32>
    "tpu.trace_start"() <{level = 10 : i32, message = "fbd,fdh->fbh"}> : () -> ()
    %cst_14 = arith.constant dense<0.000000e+00> : vector<12x2x32xf32>
    %24 = tpu.matmul %22, %23, %cst_14 {dimension_numbers = #tpu.dot_dimension_numbers<[2], [1], [1], [2], [0, 0, 0, 1, 1, 2], [0], [0]>} : vector<12x2x32xf32>, vector<12x32x32xf32>, vector<12x2x32xf32> -> vector<12x2x32xf32>
    "tpu.trace_stop"() : () -> ()
    %c0_15 = arith.constant 0 : index
    %c0_16 = arith.constant 0 : index
    %c0_17 = arith.constant 0 : index
    %25 = vector.load %arg5[%c0_15, %c0_16, %c0_17] : memref<12x1x32xf32, #tpu.memory_space<vmem>>, vector<12x1x32xf32>
    %26 = vector.broadcast %25 : vector<12x1x32xf32> to vector<12x2x32xf32>
    %27 = arith.addf %24, %26 : vector<12x2x32xf32>
    %cst_18 = arith.constant 0.000000e+00 : f32
    %28 = vector.broadcast %cst_18 : f32 to vector<12x2x32xf32>
    %29 = arith.maximumf %27, %28 : vector<12x2x32xf32>
    %c0_19 = arith.constant 0 : index
    %c0_20 = arith.constant 0 : index
    %c0_21 = arith.constant 0 : index
    %30 = vector.load %arg6[%c0_19, %c0_20, %c0_21] : memref<12x32x3xf32, #tpu.memory_space<vmem>>, vector<12x32x3xf32>
    "tpu.trace_start"() <{level = 10 : i32, message = "fbh,fhc->fbc"}> : () -> ()
    %cst_22 = arith.constant dense<0.000000e+00> : vector<12x2x3xf32>
    %31 = tpu.matmul %29, %30, %cst_22 {dimension_numbers = #tpu.dot_dimension_numbers<[2], [1], [1], [2], [0, 0, 0, 1, 1, 2], [0], [0]>} : vector<12x2x32xf32>, vector<12x32x3xf32>, vector<12x2x3xf32> -> vector<12x2x3xf32>
    "tpu.trace_stop"() : () -> ()
    %c0_23 = arith.constant 0 : index
    %c0_24 = arith.constant 0 : index
    %c0_25 = arith.constant 0 : index
    %32 = vector.load %arg7[%c0_23, %c0_24, %c0_25] : memref<12x1x3xf32, #tpu.memory_space<vmem>>, vector<12x1x3xf32>
    %33 = vector.broadcast %32 : vector<12x1x3xf32> to vector<12x2x3xf32>
    %34 = arith.addf %31, %33 : vector<12x2x3xf32>
    %c0_26 = arith.constant 0 : index
    %c0_27 = arith.constant 0 : index
    %c0_28 = arith.constant 0 : index
    %35 = vector.load %arg8[%c0_26, %c0_27, %c0_28] : memref<12x2x3xf32, #tpu.memory_space<vmem>>, vector<12x2x3xf32>
    tpu.vector_store %arg8[%c0_26, %c0_27, %c0_28], %34 {strides = array<i32>} : memref<12x2x3xf32, #tpu.memory_space<vmem>>, vector<12x2x3xf32>,
    return
  }
  func.func @transform_0(%arg0: i32) -> (i32, i32, i32) {
    %c0_i32 = arith.constant 0 : i32
    %c0_i32_0 = arith.constant 0 : i32
    %c0_i32_1 = arith.constant 0 : i32
    return %arg0, %c0_i32, %c0_i32_0 : i32, i32, i32
  }
  func.func @transform_1(%arg0: i32) -> (i32, i32, i32) {
    %c0_i32 = arith.constant 0 : i32
    %c0_i32_0 = arith.constant 0 : i32
    %c0_i32_1 = arith.constant 0 : i32
    return %arg0, %c0_i32, %c0_i32_0 : i32, i32, i32
  }
  func.func @transform_2(%arg0: i32) -> (i32, i32) {
    %c0_i32 = arith.constant 0 : i32
    %c0_i32_0 = arith.constant 0 : i32
    %c0_i32_1 = arith.constant 0 : i32
    return %c0_i32, %c0_i32_0 : i32, i32
  }
  func.func @transform_3(%arg0: i32) -> (i32, i32, i32) {
    %c0_i32 = arith.constant 0 : i32
    %c0_i32_0 = arith.constant 0 : i32
    %c0_i32_1 = arith.constant 0 : i32
    %c0_i32_2 = arith.constant 0 : i32
    return %c0_i32, %c0_i32_0, %c0_i32_1 : i32, i32, i32
  }
  func.func @transform_4(%arg0: i32) -> (i32, i32, i32) {
    %c0_i32 = arith.constant 0 : i32
    %c0_i32_0 = arith.constant 0 : i32
    %c0_i32_1 = arith.constant 0 : i32
    %c0_i32_2 = arith.constant 0 : i32
    return %c0_i32, %c0_i32_0, %c0_i32_1 : i32, i32, i32
  }
  func.func @transform_5(%arg0: i32) -> (i32, i32, i32) {
    %c0_i32 = arith.constant 0 : i32
    %c0_i32_0 = arith.constant 0 : i32
    %c0_i32_1 = arith.constant 0 : i32
    %c0_i32_2 = arith.constant 0 : i32
    return %c0_i32, %c0_i32_0, %c0_i32_1 : i32, i32, i32
  }
  func.func @transform_6(%arg0: i32) -> (i32, i32, i32) {
    %c0_i32 = arith.constant 0 : i32
    %c0_i32_0 = arith.constant 0 : i32
    %c0_i32_1 = arith.constant 0 : i32
    %c0_i32_2 = arith.constant 0 : i32
    return %c0_i32, %c0_i32_0, %c0_i32_1 : i32, i32, i32
  }
  func.func @transform_7(%arg0: i32) -> (i32, i32, i32) {
    %c0_i32 = arith.constant 0 : i32
    %c0_i32_0 = arith.constant 0 : i32
    %c0_i32_1 = arith.constant 0 : i32
    return %c0_i32, %arg0, %c0_i32_0 : i32, i32, i32
  }
}

</mosaic_0001>

<llo_original>
// kernel: tpu_custom_call.1
$region0: #{tpu_custom_call.1}
  #allocation0 [shape = 'u32[]', space=smem, size = 0x4, offset = 0x4, fixed_abs, tag = 'smem constant byte address 0x4 - core index']
  #allocation1 [shape = 'u32[144,128]{1,0:T(1,128)}', space=vmem, size = 0x12000, scoped, tag = 'internal scratch']
  %s0 = inlined_call_operand.vmem [shape: f32[2,8,32], index: 0, kind: input, shape index: {}]
  %s1 = inlined_call_operand.vmem [shape: f32[2,1,8], index: 1, kind: input, shape index: {}]
  %s2 = inlined_call_operand.vmem [shape: f32[12,32], index: 2, kind: input, shape index: {}]
  %s3 = inlined_call_operand.vmem [shape: f32[12,32,32], index: 3, kind: input, shape index: {}]
  %s4 = inlined_call_operand.vmem [shape: f32[12,1,32], index: 4, kind: input, shape index: {}]
  %s5 = inlined_call_operand.vmem [shape: f32[12,32,3], index: 5, kind: input, shape index: {}]
  %s6 = inlined_call_operand.vmem [shape: f32[12,1,3], index: 6, kind: input, shape index: {}]
  %s7 = inlined_call_operand.vmem [shape: f32[12,2,3], index: 7, kind: output, shape index: {}]
  %s8 = sld [smem:[#allocation0]]
  $region38: #{tpu_custom_call.1} parent=0
    _
  %s10 = ssub.s32 1, %s8
  %s11 = scalar_select 0, %s10, %s8
  // Predicated region
  $region2: #{tpu_custom_call.1} parent=0 // pred_check
    _
  $region3: #{tpu_custom_call.1} parent=0 // pred_check_branch
    %13 = sbr.rel (0) target = $region5
  $region4: #{tpu_custom_call.1} parent=0 // pred_region
    _
  $region5: #{tpu_custom_call.1} parent=0 // pred_fallthru
    _
  // Predicated region
  $region6: #{tpu_custom_call.1} parent=0 // pred_check
    _
  $region7: #{tpu_custom_call.1} parent=0 // pred_check_branch
    %15 = sbr.rel (0) target = $region9
  $region8: #{tpu_custom_call.1} parent=0 // pred_region
    _
  $region9: #{tpu_custom_call.1} parent=0 // pred_fallthru
    _
  // Predicated region
  $region10: #{tpu_custom_call.1} parent=0 // pred_check
    _
  $region11: #{tpu_custom_call.1} parent=0 // pred_check_branch
    %17 = sbr.rel (0) target = $region13
  $region12: #{tpu_custom_call.1} parent=0 // pred_region
    _
  $region13: #{tpu_custom_call.1} parent=0 // pred_fallthru
    _
  // Predicated region
  $region14: #{tpu_custom_call.1} parent=0 // pred_check
    _
  $region15: #{tpu_custom_call.1} parent=0 // pred_check_branch
    %19 = sbr.rel (0) target = $region17
  $region16: #{tpu_custom_call.1} parent=0 // pred_region
    _
  $region17: #{tpu_custom_call.1} parent=0 // pred_fallthru
    _
  // Predicated region
  $region18: #{tpu_custom_call.1} parent=0 // pred_check
    _
  $region19: #{tpu_custom_call.1} parent=0 // pred_check_branch
    %21 = sbr.rel (0) target = $region21
  $region20: #{tpu_custom_call.1} parent=0 // pred_region
    _
  $region21: #{tpu_custom_call.1} parent=0 // pred_fallthru
    _
  // Predicated region
  $region22: #{tpu_custom_call.1} parent=0 // pred_check
    _
  $region23: #{tpu_custom_call.1} parent=0 // pred_check_branch
    %23 = sbr.rel (0) target = $region25
  $region24: #{tpu_custom_call.1} parent=0 // pred_region
    _
  $region25: #{tpu_custom_call.1} parent=0 // pred_fallthru
    _
  // Predicated region
  $region26: #{tpu_custom_call.1} parent=0 // pred_check
    _
  $region27: #{tpu_custom_call.1} parent=0 // pred_check_branch
    %25 = sbr.rel (0) target = $region29
  $region28: #{tpu_custom_call.1} parent=0 // pred_region
    _
  $region29: #{tpu_custom_call.1} parent=0 // pred_fallthru
    _
  %v26 = vld [vmem:[%s0] sm:$0xff]
  %v27 = vld [vmem:[%s0 + $0x8] sm:$0xff]
  %v28 = vld [vmem:[%s1] sm:$0x1]
  %v29 = vld [vmem:[%s1 + $0x1] sm:$0x1]
  %v30 = vld [vmem:[%s2] sm:$0xff]
  %v31 = vld [vmem:[%s2 + $0x8] sm:$0xf]
  %vm32 = vcmask 261120
  %v34 = vsel %vm32, %v30, 0
  %v37 = vsel %vm32, %v31, 0
  %v40 = vsel %vm32, %v26, 0
  %42 = vmatprep.subr.mxu0 0.0
  %43 = vmatpush1.xpose.msra.mxu0 %v40
  %44 = vmatprep.subr.mxu0 0.0
  %45 = vmatpush1.xpose.msra.mxu0 0.0
  %46 = vmatprep.subr.mxu0 0.0
  %47 = vmatpush1.xpose.msra.mxu0 0.0
  %48 = vmatprep.subr.mxu0 0.0
  %49 = vmatpush1.xpose.msra.mxu0 0.0
  %50 = vmatprep.subr.mxu0 0.0
  %51 = vmatpush1.xpose.msra.mxu0 0.0
  %52 = vmatprep.subr.mxu0 0.0
  %53 = vmatpush1.xpose.msra.mxu0 0.0
  %54 = vmatprep.subr.mxu0 0.0
  %55 = vmatpush1.xpose.msra.mxu0 0.0
  %56 = vmatprep.subr.mxu0 0.0
  %57 = vmatpush1.xpose.msra.mxu0 0.0
  %58 = vmatprep.subr.mxu0 0.0
  %59 = vmatpush1.xpose.msra.mxu0 0.0
  %60 = vmatprep.subr.mxu0 0.0
  %61 = vmatpush1.xpose.msra.mxu0 0.0
  %62 = vmatprep.subr.mxu0 0.0
  %63 = vmatpush1.xpose.msra.mxu0 0.0
  %64 = vmatprep.subr.mxu0 0.0
  %65 = vmatpush1.xpose.msra.mxu0 0.0
  %66 = vmatprep.subr.mxu0 0.0
  %67 = vmatpush1.xpose.msra.mxu0 0.0
  %68 = vmatprep.subr.mxu0 0.0
  %69 = vmatpush1.xpose.msra.mxu0 0.0
  %70 = vmatprep.subr.mxu0 0.0
  %71 = vmatpush1.xpose.msra.mxu0 0.0
  %72 = vmatprep.subr.mxu0 0.0
  %73 = vmatpush1.xpose.msra.mxu0 0.0
  %74 = vmatprep.subr.mxu0 0.0
  %75 = vmatpush1.xpose.msra.mxu0 0.0
  %76 = vmatprep.subr.mxu0 0.0
  %77 = vmatpush1.xpose.msra.mxu0 0.0
  %78 = vmatprep.subr.mxu0 0.0
  %79 = vmatpush1.xpose.msra.mxu0 0.0
  %80 = vmatprep.subr.mxu0 0.0
  %81 = vmatpush1.xpose.msra.mxu0 0.0
  %82 = vmatprep.subr.mxu0 0.0
  %83 = vmatpush1.xpose.msra.mxu0 0.0
  %84 = vmatprep.subr.mxu0 0.0
  %85 = vmatpush1.xpose.msra.mxu0 0.0
  %86 = vmatprep.subr.mxu0 0.0
  %87 = vmatpush1.xpose.msra.mxu0 0.0
  %88 = vmatprep.subr.mxu0 0.0
  %89 = vmatpush1.xpose.msra.mxu0 0.0
  %90 = vmatprep.subr.mxu0 0.0
  %91 = vmatpush1.xpose.msra.mxu0 0.0
  %92 = vmatprep.subr.mxu0 0.0
  %93 = vmatpush1.xpose.msra.mxu0 0.0
  %94 = vmatprep.subr.mxu0 0.0
  %95 = vmatpush1.xpose.msra.mxu0 0.0
  %96 = vmatprep.subr.mxu0 0.0
  %97 = vmatpush1.xpose.msra.mxu0 0.0
  %98 = vmatprep.subr.mxu0 0.0
  %99 = vmatpush1.xpose.msra.mxu0 0.0
  %100 = vmatprep.subr.mxu0 0.0
  %101 = vmatpush1.xpose.msra.mxu0 0.0
  %102 = vmatprep.subr.mxu0 0.0
  %103 = vmatpush1.xpose.msra.mxu0 0.0
  %104 = vmatprep.subr.mxu0 0.0
  %105 = vmatpush1.xpose.msra.mxu0 0.0
  %106 = vmatprep.mubr.f32.mxu0 0.0
  %107 = vmatmul.mubr.f32.gmra.mrb[0].mxu0 %v34
  %v108 = vpop.f32.mrb[0].mxu0
  %v109 = vadd.f32 0.0, %v108
  %v110 = vpop.f32.mrb[0].mxu0
  %111 = vmatprep.mubr.f32.mxu0 0.0
  %112 = vmatmul.mubr.f32.gmra.mrb[0].mxu0 %v37
  %v113 = vpop.f32.mrb[0].mxu0
  %v114 = vadd.f32 0.0, %v113
  %v115 = vpop.f32.mrb[0].mxu0
  %116 = vdwg.mxu0
  %v118 = vsel %vm32, %v27, 0
  %120 = vmatprep.subr.mxu0 0.0
  %121 = vmatpush1.xpose.msra.mxu0 %v118
  %122 = vmatprep.subr.mxu0 0.0
  %123 = vmatpush1.xpose.msra.mxu0 0.0
  %124 = vmatprep.subr.mxu0 0.0
  %125 = vmatpush1.xpose.msra.mxu0 0.0
  %126 = vmatprep.subr.mxu0 0.0
  %127 = vmatpush1.xpose.msra.mxu0 0.0
  %128 = vmatprep.subr.mxu0 0.0
  %129 = vmatpush1.xpose.msra.mxu0 0.0
  %130 = vmatprep.subr.mxu0 0.0
  %131 = vmatpush1.xpose.msra.mxu0 0.0
  %132 = vmatprep.subr.mxu0 0.0
  %133 = vmatpush1.xpose.msra.mxu0 0.0
  %134 = vmatprep.subr.mxu0 0.0
  %135 = vmatpush1.xpose.msra.mxu0 0.0
  %136 = vmatprep.subr.mxu0 0.0
  %137 = vmatpush1.xpose.msra.mxu0 0.0
  %138 = vmatprep.subr.mxu0 0.0
  %139 = vmatpush1.xpose.msra.mxu0 0.0
  %140 = vmatprep.subr.mxu0 0.0
  %141 = vmatpush1.xpose.msra.mxu0 0.0
  %142 = vmatprep.subr.mxu0 0.0
  %143 = vmatpush1.xpose.msra.mxu0 0.0
  %144 = vmatprep.subr.mxu0 0.0
  %145 = vmatpush1.xpose.msra.mxu0 0.0
  %146 = vmatprep.subr.mxu0 0.0
  %147 = vmatpush1.xpose.msra.mxu0 0.0
  %148 = vmatprep.subr.mxu0 0.0
  %149 = vmatpush1.xpose.msra.mxu0 0.0
  %150 = vmatprep.subr.mxu0 0.0
  %151 = vmatpush1.xpose.msra.mxu0 0.0
  %152 = vmatprep.subr.mxu0 0.0
  %153 = vmatpush1.xpose.msra.mxu0 0.0
  %154 = vmatprep.subr.mxu0 0.0
  %155 = vmatpush1.xpose.msra.mxu0 0.0
  %156 = vmatprep.subr.mxu0 0.0
  %157 = vmatpush1.xpose.msra.mxu0 0.0
  %158 = vmatprep.subr.mxu0 0.0
  %159 = vmatpush1.xpose.msra.mxu0 0.0
  %160 = vmatprep.subr.mxu0 0.0
  %161 = vmatpush1.xpose.msra.mxu0 0.0
  %162 = vmatprep.subr.mxu0 0.0
  %163 = vmatpush1.xpose.msra.mxu0 0.0
  %164 = vmatprep.subr.mxu0 0.0
  %165 = vmatpush1.xpose.msra.mxu0 0.0
  %166 = vmatprep.subr.mxu0 0.0
  %167 = vmatpush1.xpose.msra.mxu0 0.0
  %168 = vmatprep.subr.mxu0 0.0
  %169 = vmatpush1.xpose.msra.mxu0 0.0
  %170 = vmatprep.subr.mxu0 0.0
  %171 = vmatpush1.xpose.msra.mxu0 0.0
  %172 = vmatprep.subr.mxu0 0.0
  %173 = vmatpush1.xpose.msra.mxu0 0.0
  %174 = vmatprep.subr.mxu0 0.0
  %175 = vmatpush1.xpose.msra.mxu0 0.0
  %176 = vmatprep.subr.mxu0 0.0
  %177 = vmatpush1.xpose.msra.mxu0 0.0
  %178 = vmatprep.subr.mxu0 0.0
  %179 = vmatpush1.xpose.msra.mxu0 0.0
  %180 = vmatprep.subr.mxu0 0.0
  %181 = vmatpush1.xpose.msra.mxu0 0.0
  %182 = vmatprep.subr.mxu0 0.0
  %183 = vmatpush1.xpose.msra.mxu0 0.0
  %184 = vmatprep.mubr.f32.mxu0 0.0
  %185 = vmatmul.mubr.f32.gmra.mrb[0].mxu0 %v34
  %v186 = vpop.f32.mrb[0].mxu0
  %v187 = vadd.f32 0.0, %v186
  %v188 = vpop.f32.mrb[0].mxu0
  %189 = vmatprep.mubr.f32.mxu0 0.0
  %190 = vmatmul.mubr.f32.gmra.mrb[0].mxu0 %v37
  %v191 = vpop.f32.mrb[0].mxu0
  %v192 = vadd.f32 0.0, %v191
  %v193 = vpop.f32.mrb[0].mxu0
  %194 = vdwg.mxu0
  %v195 = vmul.f32 %v109, 0.17677669
  %v196 = vmul.f32 %v114, 0.17677669
  %v197 = vmul.f32 %v187, 0.17677669
  %v198 = vmul.f32 %v192, 0.17677669
  %v201 = vlaneseq
  %v202 = vshrl.u32 %v201, 7
  %v203 = vsub.s32 0, %v202
  %v204 = vrot.slane %v28, %v203
  %v205 = vlaneseq
  %v206 = vshrl.u32 %v205, 7
  %v207 = vsub.s32 0, %v206
  %v208 = vrot.slane %v29, %v207
  %v211 = vadd.f32 %v195, %v204
  %v212 = vadd.f32 %v196, %v204
  %v213 = vadd.f32 %v197, %v208
  %v214 = vadd.f32 %v198, %v208
  %vm215 = vcmask 64512
  %v216 = vsel %vm215, %v211, -inf
  %217 = vmax.xlane.f32.xlu0 %v216
  %v218 = vpop.xlane.xlu0 %217
  %vm219 = vcmask 60416
  %v220 = vsel %vm219, %v212, -inf
  %221 = vmax.xlane.f32.xlu0 %v220
  %v222 = vpop.xlane.xlu0 %221
  %v223 = vsel %vm215, %v213, -inf
  %224 = vmax.xlane.f32.xlu0 %v223
  %v225 = vpop.xlane.xlu0 %224
  %v226 = vsel %vm219, %v214, -inf
  %227 = vmax.xlane.f32.xlu0 %v226
  %v228 = vpop.xlane.xlu0 %227
  %v229 = vsub.f32 %v211, %v218
  %v230 = vsub.f32 %v212, %v222
  %v231 = vsub.f32 %v213, %v225
  %v232 = vsub.f32 %v214, %v228
  %v233 = vmul.f32 %v229, 1.442695
  %v234 = vpow.pop %v233
  %v235 = vmul.f32 %v230, 1.442695
  %v236 = vpow.pop %v235
  %v237 = vmul.f32 %v231, 1.442695
  %v238 = vpow.pop %v237
  %v239 = vmul.f32 %v232, 1.442695
  %v240 = vpow.pop %v239
  %v241 = vsel %vm215, %v234, 0.0
  %242 = vadd.xlane.f32.xlu0 %v241
  %v243 = vpop.xlane.xlu0 %242
  %v244 = vsel %vm219, %v236, 0.0
  %245 = vadd.xlane.f32.xlu0 %v244
  %v246 = vpop.xlane.xlu0 %245
  %v247 = vsel %vm215, %v238, 0.0
  %248 = vadd.xlane.f32.xlu0 %v247
  %v249 = vpop.xlane.xlu0 %248
  %v250 = vsel %vm219, %v240, 0.0
  %251 = vadd.xlane.f32.xlu0 %v250
  %v252 = vpop.xlane.xlu0 %251
  %v253 = vrcp.pop %v243
  %v254 = vrcp.pop %v246
  %v255 = vrcp.pop %v249
  %v256 = vrcp.pop %v252
  %v257 = vmul.f32 %v234, %v253
  %v258 = vmul.f32 %v236, %v254
  %v259 = vmul.f32 %v238, %v255
  %v260 = vmul.f32 %v240, %v256
  %v262 = vsel %vm215, %v257, 0
  %v265 = vsel %vm215, %v258, 0
  %267 = vmatprep.subr.mxu0 0.0
  %268 = vmatpush1.msra.mxu0 %v26
  %269 = vmatprep.subr.mxu0 0.0
  %270 = vmatpush1.msra.mxu0 0.0
  %271 = vmatprep.subr.mxu0 0.0
  %272 = vmatpush1.msra.mxu0 0.0
  %273 = vmatprep.subr.mxu0 0.0
  %274 = vmatpush1.msra.mxu0 0.0
  %275 = vmatprep.subr.mxu0 0.0
  %276 = vmatpush1.msra.mxu0 0.0
  %277 = vmatprep.subr.mxu0 0.0
  %278 = vmatpush1.msra.mxu0 0.0
  %279 = vmatprep.subr.mxu0 0.0
  %280 = vmatpush1.msra.mxu0 0.0
  %281 = vmatprep.subr.mxu0 0.0
  %282 = vmatpush1.msra.mxu0 0.0
  %283 = vmatprep.subr.mxu0 0.0
  %284 = vmatpush1.msra.mxu0 0.0
  %285 = vmatprep.subr.mxu0 0.0
  %286 = vmatpush1.msra.mxu0 0.0
  %287 = vmatprep.subr.mxu0 0.0
  %288 = vmatpush1.msra.mxu0 0.0
  %289 = vmatprep.subr.mxu0 0.0
  %290 = vmatpush1.msra.mxu0 0.0
  %291 = vmatprep.subr.mxu0 0.0
  %292 = vmatpush1.msra.mxu0 0.0
  %293 = vmatprep.subr.mxu0 0.0
  %294 = vmatpush1.msra.mxu0 0.0
  %295 = vmatprep.subr.mxu0 0.0
  %296 = vmatpush1.msra.mxu0 0.0
  %297 = vmatprep.subr.mxu0 0.0
  %298 = vmatpush1.msra.mxu0 0.0
  %299 = vmatprep.subr.mxu0 0.0
  %300 = vmatpush1.msra.mxu0 0.0
  %301 = vmatprep.subr.mxu0 0.0
  %302 = vmatpush1.msra.mxu0 0.0
  %303 = vmatprep.subr.mxu0 0.0
  %304 = vmatpush1.msra.mxu0 0.0
  %305 = vmatprep.subr.mxu0 0.0
  %306 = vmatpush1.msra.mxu0 0.0
  %307 = vmatprep.subr.mxu0 0.0
  %308 = vmatpush1.msra.mxu0 0.0
  %309 = vmatprep.subr.mxu0 0.0
  %310 = vmatpush1.msra.mxu0 0.0
  %311 = vmatprep.subr.mxu0 0.0
  %312 = vmatpush1.msra.mxu0 0.0
  %313 = vmatprep.subr.mxu0 0.0
  %314 = vmatpush1.msra.mxu0 0.0
  %315 = vmatprep.subr.mxu0 0.0
  %316 = vmatpush1.msra.mxu0 0.0
  %317 = vmatprep.subr.mxu0 0.0
  %318 = vmatpush1.msra.mxu0 0.0
  %319 = vmatprep.subr.mxu0 0.0
  %320 = vmatpush1.msra.mxu0 0.0
  %321 = vmatprep.subr.mxu0 0.0
  %322 = vmatpush1.msra.mxu0 0.0
  %323 = vmatprep.subr.mxu0 0.0
  %324 = vmatpush1.msra.mxu0 0.0
  %325 = vmatprep.subr.mxu0 0.0
  %326 = vmatpush1.msra.mxu0 0.0
  %327 = vmatprep.subr.mxu0 0.0
  %328 = vmatpush1.msra.mxu0 0.0
  %329 = vmatprep.subr.mxu0 0.0
  %330 = vmatpush1.msra.mxu0 0.0
  %331 = vmatprep.mubr.f32.mxu0 0.0
  %332 = vmatmul.mubr.f32.gmra.mrb[0].mxu0 %v262
  %v333 = vpop.f32.mrb[0].mxu0
  %v334 = vadd.f32 0.0, %v333
  %v335 = vpop.f32.mrb[0].mxu0
  %336 = vmatprep.mubr.f32.mxu0 0.0
  %337 = vmatmul.mubr.f32.gmra.mrb[0].mxu0 %v265
  %v338 = vpop.f32.mrb[0].mxu0
  %v339 = vadd.f32 0.0, %v338
  %v340 = vpop.f32.mrb[0].mxu0
  %341 = vdwg.mxu0
  %v343 = vsel %vm215, %v259, 0
  %v346 = vsel %vm215, %v260, 0
  %348 = vmatprep.subr.mxu0 0.0
  %349 = vmatpush1.msra.mxu0 %v27
  %350 = vmatprep.subr.mxu0 0.0
  %351 = vmatpush1.msra.mxu0 0.0
  %352 = vmatprep.subr.mxu0 0.0
  %353 = vmatpush1.msra.mxu0 0.0
  %354 = vmatprep.subr.mxu0 0.0
  %355 = vmatpush1.msra.mxu0 0.0
  %356 = vmatprep.subr.mxu0 0.0
  %357 = vmatpush1.msra.mxu0 0.0
  %358 = vmatprep.subr.mxu0 0.0
  %359 = vmatpush1.msra.mxu0 0.0
  %360 = vmatprep.subr.mxu0 0.0
  %361 = vmatpush1.msra.mxu0 0.0
  %362 = vmatprep.subr.mxu0 0.0
  %363 = vmatpush1.msra.mxu0 0.0
  %364 = vmatprep.subr.mxu0 0.0
  %365 = vmatpush1.msra.mxu0 0.0
  %366 = vmatprep.subr.mxu0 0.0
  %367 = vmatpush1.msra.mxu0 0.0
  %368 = vmatprep.subr.mxu0 0.0
  %369 = vmatpush1.msra.mxu0 0.0
  %370 = vmatprep.subr.mxu0 0.0
  %371 = vmatpush1.msra.mxu0 0.0
  %372 = vmatprep.subr.mxu0 0.0
  %373 = vmatpush1.msra.mxu0 0.0
  %374 = vmatprep.subr.mxu0 0.0
  %375 = vmatpush1.msra.mxu0 0.0
  %376 = vmatprep.subr.mxu0 0.0
  %377 = vmatpush1.msra.mxu0 0.0
  %378 = vmatprep.subr.mxu0 0.0
  %379 = vmatpush1.msra.mxu0 0.0
  %380 = vmatprep.subr.mxu0 0.0
  %381 = vmatpush1.msra.mxu0 0.0
  %382 = vmatprep.subr.mxu0 0.0
  %383 = vmatpush1.msra.mxu0 0.0
  %384 = vmatprep.subr.mxu0 0.0
  %385 = vmatpush1.msra.mxu0 0.0
  %386 = vmatprep.subr.mxu0 0.0
  %387 = vmatpush1.msra.mxu0 0.0
  %388 = vmatprep.subr.mxu0 0.0
  %389 = vmatpush1.msra.mxu0 0.0
  %390 = vmatprep.subr.mxu0 0.0
  %391 = vmatpush1.msra.mxu0 0.0
  %392 = vmatprep.subr.mxu0 0.0
  %393 = vmatpush1.msra.mxu0 0.0
  %394 = vmatprep.subr.mxu0 0.0
  %395 = vmatpush1.msra.mxu0 0.0
  %396 = vmatprep.subr.mxu0 0.0
  %397 = vmatpush1.msra.mxu0 0.0
  %398 = vmatprep.subr.mxu0 0.0
  %399 = vmatpush1.msra.mxu0 0.0
  %400 = vmatprep.subr.mxu0 0.0
  %401 = vmatpush1.msra.mxu0 0.0
  %402 = vmatprep.subr.mxu0 0.0
  %403 = vmatpush1.msra.mxu0 0.0
  %404 = vmatprep.subr.mxu0 0.0
  %405 = vmatpush1.msra.mxu0 0.0
  %406 = vmatprep.subr.mxu0 0.0
  %407 = vmatpush1.msra.mxu0 0.0
  %408 = vmatprep.subr.mxu0 0.0
  %409 = vmatpush1.msra.mxu0 0.0
  %410 = vmatprep.subr.mxu0 0.0
  %411 = vmatpush1.msra.mxu0 0.0
  %412 = vmatprep.mubr.f32.mxu0 0.0
  %413 = vmatmul.mubr.f32.gmra.mrb[0].mxu0 %v343
  %v414 = vpop.f32.mrb[0].mxu0
  %v415 = vadd.f32 0.0, %v414
  %v416 = vpop.f32.mrb[0].mxu0
  %417 = vmatprep.mubr.f32.mxu0 0.0
  %418 = vmatmul.mubr.f32.gmra.mrb[0].mxu0 %v346
  %v419 = vpop.f32.mrb[0].mxu0
  %v420 = vadd.f32 0.0, %v419
  %v421 = vpop.f32.mrb[0].mxu0
  %422 = vdwg.mxu0
  %v423 = vcombine.high %v334, 0.0
  %v425 = vunpack.c.l.s4 1983009808
  %v426 = vunpack.c.0.s8 %v425
  %v427 = vlaneseq
  %v428 = vshrl.u32 %v427, 7
  %v429 = vsub.s32 %v426, %v428
  %v430 = vrot.slane %v334, %v429
  %v432 = vunpack.c.l.s4 1983009808
  %v433 = vunpack.c.0.s8 %v432
  %v434 = vlaneseq
  %v435 = vshrl.u32 %v434, 7
  %v436 = vsub.s32 %v433, %v435
  %v437 = vrot.slane %v423, %v436
  %v438 = vcombine.high %v415, 0.0
  %v440 = vunpack.c.l.s4 1983009808
  %v441 = vunpack.c.0.s8 %v440
  %v442 = vlaneseq
  %v443 = vshrl.u32 %v442, 7
  %v444 = vsub.s32 %v441, %v443
  %v445 = vrot.slane %v415, %v444
  %v447 = vunpack.c.l.s4 1983009808
  %v448 = vunpack.c.0.s8 %v447
  %v449 = vlaneseq
  %v450 = vshrl.u32 %v449, 7
  %v451 = vsub.s32 %v448, %v450
  %v452 = vrot.slane %v438, %v451
  %v453 = vcombine.low %v430, %v445
  %v454 = vcombine.high %v430, %v445
  %v456 = vunpack.c.l.s4 1934713408
  %v457 = vunpack.c.0.s8 %v456
  %v458 = vlaneseq
  %v459 = vshrl.u32 %v458, 7
  %v460 = vsub.s32 %v457, %v459
  %v461 = vrot.slane %v453, %v460
  %v463 = vunpack.c.l.s4 1934713408
  %v464 = vunpack.c.0.s8 %v463
  %v465 = vlaneseq
  %v466 = vshrl.u32 %v465, 7
  %v467 = vsub.s32 %v464, %v466
  %v468 = vrot.slane %v454, %v467
  %v469 = vcombine.low %v437, %v452
  %v470 = vcombine.high %v437, %v452
  %v472 = vunpack.c.l.s4 1934713408
  %v473 = vunpack.c.0.s8 %v472
  %v474 = vlaneseq
  %v475 = vshrl.u32 %v474, 7
  %v476 = vsub.s32 %v473, %v475
  %v477 = vrot.slane %v469, %v476
  %v479 = vunpack.c.l.s4 1934713408
  %v480 = vunpack.c.0.s8 %v479
  %v481 = vlaneseq
  %v482 = vshrl.u32 %v481, 7
  %v483 = vsub.s32 %v480, %v482
  %v484 = vrot.slane %v470, %v483
  %v485 = vcombine.high %v461, 0.0
  %v486 = vcombine.high %v468, 0.0
  %v487 = vcombine.high %v477, 0.0
  %v488 = vcombine.high %v484, 0.0
  %v490 = vunpack.c.l.s4 1983009808
  %v491 = vunpack.c.0.s8 %v490
  %v492 = vlaneseq
  %v493 = vshrl.u32 %v492, 7
  %v494 = vsub.s32 %v491, %v493
  %v495 = vrot.slane %v339, %v494
  %v497 = vunpack.c.l.s4 1983009808
  %v498 = vunpack.c.0.s8 %v497
  %v499 = vlaneseq
  %v500 = vshrl.u32 %v499, 7
  %v501 = vsub.s32 %v498, %v500
  %v502 = vrot.slane %v420, %v501
  %v503 = vcombine.low %v495, %v502
  %v504 = vcombine.high %v495, %v502
  %v506 = vunpack.c.l.s4 1934713408
  %v507 = vunpack.c.0.s8 %v506
  %v508 = vlaneseq
  %v509 = vshrl.u32 %v508, 7
  %v510 = vsub.s32 %v507, %v509
  %v511 = vrot.slane %v503, %v510
  %v513 = vunpack.c.l.s4 1934713408
  %v514 = vunpack.c.0.s8 %v513
  %v515 = vlaneseq
  %v516 = vshrl.u32 %v515, 7
  %v517 = vsub.s32 %v514, %v516
  %v518 = vrot.slane %v504, %v517
  %v519 = vcombine.high %v511, 0.0
  %v520 = vcombine.high %v518, 0.0
  %v521 = vld [vmem:[%s3] sm:$0xff]
  %v522 = vld [vmem:[%s3 + $0x8] sm:$0xff]
  %v523 = vld [vmem:[%s3 + $0x10] sm:$0xff]
  %v524 = vld [vmem:[%s3 + $0x18] sm:$0xff]
  %v525 = vld [vmem:[%s3 + $0x20] sm:$0xff]
  %v526 = vld [vmem:[%s3 + $0x28] sm:$0xff]
  %v527 = vld [vmem:[%s3 + $0x30] sm:$0xff]
  %v528 = vld [vmem:[%s3 + $0x38] sm:$0xff]
  %v529 = vld [vmem:[%s3 + $0x40] sm:$0xff]
  %v530 = vld [vmem:[%s3 + $0x48] sm:$0xff]
  %v531 = vld [vmem:[%s3 + $0x50] sm:$0xff]
  %v532 = vld [vmem:[%s3 + $0x58] sm:$0xff]
  %v533 = vld [vmem:[%s3 + $0x60] sm:$0xff]
  %v534 = vld [vmem:[%s3 + $0x68] sm:$0xff]
  %v535 = vld [vmem:[%s3 + $0x70] sm:$0xff]
  %v536 = vld [vmem:[%s3 + $0x78] sm:$0xff]
  %v537 = vld [vmem:[%s3 + $0x80] sm:$0xff]
  %v538 = vld [vmem:[%s3 + $0x88] sm:$0xff]
  %v539 = vld [vmem:[%s3 + $0x90] sm:$0xff]
  %v540 = vld [vmem:[%s3 + $0x98] sm:$0xff]
  %v541 = vld [vmem:[%s3 + $0xa0] sm:$0xff]
  %v542 = vld [vmem:[%s3 + $0xa8] sm:$0xff]
  %v543 = vld [vmem:[%s3 + $0xb0] sm:$0xff]
  %v544 = vld [vmem:[%s3 + $0xb8] sm:$0xff]
  %v545 = vld [vmem:[%s3 + $0xc0] sm:$0xff]
  %v546 = vld [vmem:[%s3 + $0xc8] sm:$0xff]
  %v547 = vld [vmem:[%s3 + $0xd0] sm:$0xff]
  %v548 = vld [vmem:[%s3 + $0xd8] sm:$0xff]
  %v549 = vld [vmem:[%s3 + $0xe0] sm:$0xff]
  %v550 = vld [vmem:[%s3 + $0xe8] sm:$0xff]
  %v551 = vld [vmem:[%s3 + $0xf0] sm:$0xff]
  %v552 = vld [vmem:[%s3 + $0xf8] sm:$0xff]
  %v553 = vld [vmem:[%s3 + $0x100] sm:$0xff]
  %v554 = vld [vmem:[%s3 + $0x108] sm:$0xff]
  %v555 = vld [vmem:[%s3 + $0x110] sm:$0xff]
  %v556 = vld [vmem:[%s3 + $0x118] sm:$0xff]
  %v557 = vld [vmem:[%s3 + $0x120] sm:$0xff]
  %v558 = vld [vmem:[%s3 + $0x128] sm:$0xff]
  %v559 = vld [vmem:[%s3 + $0x130] sm:$0xff]
  %v560 = vld [vmem:[%s3 + $0x138] sm:$0xff]
  %v561 = vld [vmem:[%s3 + $0x140] sm:$0xff]
  %v562 = vld [vmem:[%s3 + $0x148] sm:$0xff]
  %v563 = vld [vmem:[%s3 + $0x150] sm:$0xff]
  %v564 = vld [vmem:[%s3 + $0x158] sm:$0xff]
  %v565 = vld [vmem:[%s3 + $0x160] sm:$0xff]
  %v566 = vld [vmem:[%s3 + $0x168] sm:$0xff]
  %v567 = vld [vmem:[%s3 + $0x170] sm:$0xff]
  %v568 = vld [vmem:[%s3 + $0x178] sm:$0xff]
  %v569 = vld [vmem:[%s4] sm:$0x1]
  %v570 = vld [vmem:[%s4 + $0x1] sm:$0x1]
  %v571 = vld [vmem:[%s4 + $0x2] sm:$0x1]
  %v572 = vld [vmem:[%s4 + $0x3] sm:$0x1]
  %v573 = vld [vmem:[%s4 + $0x4] sm:$0x1]
  %v574 = vld [vmem:[%s4 + $0x5] sm:$0x1]
  %v575 = vld [vmem:[%s4 + $0x6] sm:$0x1]
  %v576 = vld [vmem:[%s4 + $0x7] sm:$0x1]
  %v577 = vld [vmem:[%s4 + $0x8] sm:$0x1]
  %v578 = vld [vmem:[%s4 + $0x9] sm:$0x1]
  %v579 = vld [vmem:[%s4 + $0xa] sm:$0x1]
  %v580 = vld [vmem:[%s4 + $0xb] sm:$0x1]
  %v593 = vlaneseq
  %v594 = vshrl.u32 %v593, 7
  %v595 = vsub.s32 0, %v594
  %v596 = vrot.slane %v569, %v595
  %v597 = vlaneseq
  %v598 = vshrl.u32 %v597, 7
  %v599 = vsub.s32 0, %v598
  %v600 = vrot.slane %v570, %v599
  %v601 = vlaneseq
  %v602 = vshrl.u32 %v601, 7
  %v603 = vsub.s32 0, %v602
  %v604 = vrot.slane %v571, %v603
  %v605 = vlaneseq
  %v606 = vshrl.u32 %v605, 7
  %v607 = vsub.s32 0, %v606
  %v608 = vrot.slane %v572, %v607
  %v609 = vlaneseq
  %v610 = vshrl.u32 %v609, 7
  %v611 = vsub.s32 0, %v610
  %v612 = vrot.slane %v573, %v611
  %v613 = vlaneseq
  %v614 = vshrl.u32 %v613, 7
  %v615 = vsub.s32 0, %v614
  %v616 = vrot.slane %v574, %v615
  %v617 = vlaneseq
  %v618 = vshrl.u32 %v617, 7
  %v619 = vsub.s32 0, %v618
  %v620 = vrot.slane %v575, %v619
  %v621 = vlaneseq
  %v622 = vshrl.u32 %v621, 7
  %v623 = vsub.s32 0, %v622
  %v624 = vrot.slane %v576, %v623
  %v625 = vlaneseq
  %v626 = vshrl.u32 %v625, 7
  %v627 = vsub.s32 0, %v626
  %v628 = vrot.slane %v577, %v627
  %v629 = vlaneseq
  %v630 = vshrl.u32 %v629, 7
  %v631 = vsub.s32 0, %v630
  %v632 = vrot.slane %v578, %v631
  %v633 = vlaneseq
  %v634 = vshrl.u32 %v633, 7
  %v635 = vsub.s32 0, %v634
  %v636 = vrot.slane %v579, %v635
  %v637 = vlaneseq
  %v638 = vshrl.u32 %v637, 7
  %v639 = vsub.s32 0, %v638
  %v640 = vrot.slane %v580, %v639
  %v654 = vsel %vm32, %v461, 0
  %656 = vmatprep.subr.mxu0 0.0
  %657 = vmatpush1.msra.mxu0 %v521
  %658 = vmatprep.subr.mxu0 0.0
  %659 = vmatpush1.msra.mxu0 %v522
  %660 = vmatprep.subr.mxu0 0.0
  %661 = vmatpush1.msra.mxu0 %v523
  %662 = vmatprep.subr.mxu0 0.0
  %663 = vmatpush1.msra.mxu0 %v524
  %664 = vmatprep.subr.mxu0 0.0
  %665 = vmatpush1.msra.mxu0 0.0
  %666 = vmatprep.subr.mxu0 0.0
  %667 = vmatpush1.msra.mxu0 0.0
  %668 = vmatprep.subr.mxu0 0.0
  %669 = vmatpush1.msra.mxu0 0.0
  %670 = vmatprep.subr.mxu0 0.0
  %671 = vmatpush1.msra.mxu0 0.0
  %672 = vmatprep.subr.mxu0 0.0
  %673 = vmatpush1.msra.mxu0 0.0
  %674 = vmatprep.subr.mxu0 0.0
  %675 = vmatpush1.msra.mxu0 0.0
  %676 = vmatprep.subr.mxu0 0.0
  %677 = vmatpush1.msra.mxu0 0.0
  %678 = vmatprep.subr.mxu0 0.0
  %679 = vmatpush1.msra.mxu0 0.0
  %680 = vmatprep.subr.mxu0 0.0
  %681 = vmatpush1.msra.mxu0 0.0
  %682 = vmatprep.subr.mxu0 0.0
  %683 = vmatpush1.msra.mxu0 0.0
  %684 = vmatprep.subr.mxu0 0.0
  %685 = vmatpush1.msra.mxu0 0.0
  %686 = vmatprep.subr.mxu0 0.0
  %687 = vmatpush1.msra.mxu0 0.0
  %688 = vmatprep.subr.mxu0 0.0
  %689 = vmatpush1.msra.mxu0 0.0
  %690 = vmatprep.subr.mxu0 0.0
  %691 = vmatpush1.msra.mxu0 0.0
  %692 = vmatprep.subr.mxu0 0.0
  %693 = vmatpush1.msra.mxu0 0.0
  %694 = vmatprep.subr.mxu0 0.0
  %695 = vmatpush1.msra.mxu0 0.0
  %696 = vmatprep.subr.mxu0 0.0
  %697 = vmatpush1.msra.mxu0 0.0
  %698 = vmatprep.subr.mxu0 0.0
  %699 = vmatpush1.msra.mxu0 0.0
  %700 = vmatprep.subr.mxu0 0.0
  %701 = vmatpush1.msra.mxu0 0.0
  %702 = vmatprep.subr.mxu0 0.0
  %703 = vmatpush1.msra.mxu0 0.0
  %704 = vmatprep.subr.mxu0 0.0
  %705 = vmatpush1.msra.mxu0 0.0
  %706 = vmatprep.subr.mxu0 0.0
  %707 = vmatpush1.msra.mxu0 0.0
  %708 = vmatprep.subr.mxu0 0.0
  %709 = vmatpush1.msra.mxu0 0.0
  %710 = vmatprep.subr.mxu0 0.0
  %711 = vmatpush1.msra.mxu0 0.0
  %712 = vmatprep.subr.mxu0 0.0
  %713 = vmatpush1.msra.mxu0 0.0
  %714 = vmatprep.subr.mxu0 0.0
  %715 = vmatpush1.msra.mxu0 0.0
  %716 = vmatprep.subr.mxu0 0.0
  %717 = vmatpush1.msra.mxu0 0.0
  %718 = vmatprep.subr.mxu0 0.0
  %719 = vmatpush1.msra.mxu0 0.0
  %720 = vmatprep.mubr.f32.mxu0 0.0
  %721 = vmatmul.mubr.f32.gmra.mrb[0].mxu0 %v654
  %v722 = vpop.f32.mrb[0].mxu0
  %v723 = vadd.f32 %v596, %v722
  %v724 = vpop.f32.mrb[0].mxu0
  %725 = vdwg.mxu0
  %v727 = vsel %vm32, %v485, 0
  %729 = vmatprep.subr.mxu0 0.0
  %730 = vmatpush1.msra.mxu0 %v525
  %731 = vmatprep.subr.mxu0 0.0
  %732 = vmatpush1.msra.mxu0 %v526
  %733 = vmatprep.subr.mxu0 0.0
  %734 = vmatpush1.msra.mxu0 %v527
  %735 = vmatprep.subr.mxu0 0.0
  %736 = vmatpush1.msra.mxu0 %v528
  %737 = vmatprep.subr.mxu0 0.0
  %738 = vmatpush1.msra.mxu0 0.0
  %739 = vmatprep.subr.mxu0 0.0
  %740 = vmatpush1.msra.mxu0 0.0
  %741 = vmatprep.subr.mxu0 0.0
  %742 = vmatpush1.msra.mxu0 0.0
  %743 = vmatprep.subr.mxu0 0.0
  %744 = vmatpush1.msra.mxu0 0.0
  %745 = vmatprep.subr.mxu0 0.0
  %746 = vmatpush1.msra.mxu0 0.0
  %747 = vmatprep.subr.mxu0 0.0
  %748 = vmatpush1.msra.mxu0 0.0
  %749 = vmatprep.subr.mxu0 0.0
  %750 = vmatpush1.msra.mxu0 0.0
  %751 = vmatprep.subr.mxu0 0.0
  %752 = vmatpush1.msra.mxu0 0.0
  %753 = vmatprep.subr.mxu0 0.0
  %754 = vmatpush1.msra.mxu0 0.0
  %755 = vmatprep.subr.mxu0 0.0
  %756 = vmatpush1.msra.mxu0 0.0
  %757 = vmatprep.subr.mxu0 0.0
  %758 = vmatpush1.msra.mxu0 0.0
  %759 = vmatprep.subr.mxu0 0.0
  %760 = vmatpush1.msra.mxu0 0.0
  %761 = vmatprep.subr.mxu0 0.0
  %762 = vmatpush1.msra.mxu0 0.0
  %763 = vmatprep.subr.mxu0 0.0
  %764 = vmatpush1.msra.mxu0 0.0
  %765 = vmatprep.subr.mxu0 0.0
  %766 = vmatpush1.msra.mxu0 0.0
  %767 = vmatprep.subr.mxu0 0.0
  %768 = vmatpush1.msra.mxu0 0.0
  %769 = vmatprep.subr.mxu0 0.0
  %770 = vmatpush1.msra.mxu0 0.0
  %771 = vmatprep.subr.mxu0 0.0
  %772 = vmatpush1.msra.mxu0 0.0
  %773 = vmatprep.subr.mxu0 0.0
  %774 = vmatpush1.msra.mxu0 0.0
  %775 = vmatprep.subr.mxu0 0.0
  %776 = vmatpush1.msra.mxu0 0.0
  %777 = vmatprep.subr.mxu0 0.0
  %778 = vmatpush1.msra.mxu0 0.0
  %779 = vmatprep.subr.mxu0 0.0
  %780 = vmatpush1.msra.mxu0 0.0
  %781 = vmatprep.subr.mxu0 0.0
  %782 = vmatpush1.msra.mxu0 0.0
  %783 = vmatprep.subr.mxu0 0.0
  %784 = vmatpush1.msra.mxu0 0.0
  %785 = vmatprep.subr.mxu0 0.0
  %786 = vmatpush1.msra.mxu0 0.0
  %787 = vmatprep.subr.mxu0 0.0
  %788 = vmatpush1.msra.mxu0 0.0
  %789 = vmatprep.subr.mxu0 0.0
  %790 = vmatpush1.msra.mxu0 0.0
  %791 = vmatprep.subr.mxu0 0.0
  %792 = vmatpush1.msra.mxu0 0.0
  %793 = vmatprep.mubr.f32.mxu0 0.0
  %794 = vmatmul.mubr.f32.gmra.mrb[0].mxu0 %v727
  %v795 = vpop.f32.mrb[0].mxu0
  %v796 = vadd.f32 %v600, %v795
  %v797 = vpop.f32.mrb[0].mxu0
  %798 = vdwg.mxu0
  %v800 = vsel %vm32, %v468, 0
  %802 = vmatprep.subr.mxu0 0.0
  %803 = vmatpush1.msra.mxu0 %v529
  %804 = vmatprep.subr.mxu0 0.0
  %805 = vmatpush1.msra.mxu0 %v530
  %806 = vmatprep.subr.mxu0 0.0
  %807 = vmatpush1.msra.mxu0 %v531
  %808 = vmatprep.subr.mxu0 0.0
  %809 = vmatpush1.msra.mxu0 %v532
  %810 = vmatprep.subr.mxu0 0.0
  %811 = vmatpush1.msra.mxu0 0.0
  %812 = vmatprep.subr.mxu0 0.0
  %813 = vmatpush1.msra.mxu0 0.0
  %814 = vmatprep.subr.mxu0 0.0
  %815 = vmatpush1.msra.mxu0 0.0
  %816 = vmatprep.subr.mxu0 0.0
  %817 = vmatpush1.msra.mxu0 0.0
  %818 = vmatprep.subr.mxu0 0.0
  %819 = vmatpush1.msra.mxu0 0.0
  %820 = vmatprep.subr.mxu0 0.0
  %821 = vmatpush1.msra.mxu0 0.0
  %822 = vmatprep.subr.mxu0 0.0
  %823 = vmatpush1.msra.mxu0 0.0
  %824 = vmatprep.subr.mxu0 0.0
  %825 = vmatpush1.msra.mxu0 0.0
  %826 = vmatprep.subr.mxu0 0.0
  %827 = vmatpush1.msra.mxu0 0.0
  %828 = vmatprep.subr.mxu0 0.0
  %829 = vmatpush1.msra.mxu0 0.0
  %830 = vmatprep.subr.mxu0 0.0
  %831 = vmatpush1.msra.mxu0 0.0
  %832 = vmatprep.subr.mxu0 0.0
  %833 = vmatpush1.msra.mxu0 0.0
  %834 = vmatprep.subr.mxu0 0.0
  %835 = vmatpush1.msra.mxu0 0.0
  %836 = vmatprep.subr.mxu0 0.0
  %837 = vmatpush1.msra.mxu0 0.0
  %838 = vmatprep.subr.mxu0 0.0
  %839 = vmatpush1.msra.mxu0 0.0
  %840 = vmatprep.subr.mxu0 0.0
  %841 = vmatpush1.msra.mxu0 0.0
  %842 = vmatprep.subr.mxu0 0.0
  %843 = vmatpush1.msra.mxu0 0.0
  %844 = vmatprep.subr.mxu0 0.0
  %845 = vmatpush1.msra.mxu0 0.0
  %846 = vmatprep.subr.mxu0 0.0
  %847 = vmatpush1.msra.mxu0 0.0
  %848 = vmatprep.subr.mxu0 0.0
  %849 = vmatpush1.msra.mxu0 0.0
  %850 = vmatprep.subr.mxu0 0.0
  %851 = vmatpush1.msra.mxu0 0.0
  %852 = vmatprep.subr.mxu0 0.0
  %853 = vmatpush1.msra.mxu0 0.0
  %854 = vmatprep.subr.mxu0 0.0
  %855 = vmatpush1.msra.mxu0 0.0
  %856 = vmatprep.subr.mxu0 0.0
  %857 = vmatpush1.msra.mxu0 0.0
  %858 = vmatprep.subr.mxu0 0.0
  %859 = vmatpush1.msra.mxu0 0.0
  %860 = vmatprep.subr.mxu0 0.0
  %861 = vmatpush1.msra.mxu0 0.0
  %862 = vmatprep.subr.mxu0 0.0
  %863 = vmatpush1.msra.mxu0 0.0
  %864 = vmatprep.subr.mxu0 0.0
  %865 = vmatpush1.msra.mxu0 0.0
  %866 = vmatprep.mubr.f32.mxu0 0.0
  %867 = vmatmul.mubr.f32.gmra.mrb[0].mxu0 %v800
  %v868 = vpop.f32.mrb[0].mxu0
  %v869 = vadd.f32 %v604, %v868
  %v870 = vpop.f32.mrb[0].mxu0
  %871 = vdwg.mxu0
  %v873 = vsel %vm32, %v486, 0
  %875 = vmatprep.subr.mxu0 0.0
  %876 = vmatpush1.msra.mxu0 %v533
  %877 = vmatprep.subr.mxu0 0.0
  %878 = vmatpush1.msra.mxu0 %v534
  %879 = vmatprep.subr.mxu0 0.0
  %880 = vmatpush1.msra.mxu0 %v535
  %881 = vmatprep.subr.mxu0 0.0
  %882 = vmatpush1.msra.mxu0 %v536
  %883 = vmatprep.subr.mxu0 0.0
  %884 = vmatpush1.msra.mxu0 0.0
  %885 = vmatprep.subr.mxu0 0.0
  %886 = vmatpush1.msra.mxu0 0.0
  %887 = vmatprep.subr.mxu0 0.0
  %888 = vmatpush1.msra.mxu0 0.0
  %889 = vmatprep.subr.mxu0 0.0
  %890 = vmatpush1.msra.mxu0 0.0
  %891 = vmatprep.subr.mxu0 0.0
  %892 = vmatpush1.msra.mxu0 0.0
  %893 = vmatprep.subr.mxu0 0.0
  %894 = vmatpush1.msra.mxu0 0.0
  %895 = vmatprep.subr.mxu0 0.0
  %896 = vmatpush1.msra.mxu0 0.0
  %897 = vmatprep.subr.mxu0 0.0
  %898 = vmatpush1.msra.mxu0 0.0
  %899 = vmatprep.subr.mxu0 0.0
  %900 = vmatpush1.msra.mxu0 0.0
  %901 = vmatprep.subr.mxu0 0.0
  %902 = vmatpush1.msra.mxu0 0.0
  %903 = vmatprep.subr.mxu0 0.0
  %904 = vmatpush1.msra.mxu0 0.0
  %905 = vmatprep.subr.mxu0 0.0
  %906 = vmatpush1.msra.mxu0 0.0
  %907 = vmatprep.subr.mxu0 0.0
  %908 = vmatpush1.msra.mxu0 0.0
  %909 = vmatprep.subr.mxu0 0.0
  %910 = vmatpush1.msra.mxu0 0.0
  %911 = vmatprep.subr.mxu0 0.0
  %912 = vmatpush1.msra.mxu0 0.0
  %913 = vmatprep.subr.mxu0 0.0
  %914 = vmatpush1.msra.mxu0 0.0
  %915 = vmatprep.subr.mxu0 0.0
  %916 = vmatpush1.msra.mxu0 0.0
  %917 = vmatprep.subr.mxu0 0.0
  %918 = vmatpush1.msra.mxu0 0.0
  %919 = vmatprep.subr.mxu0 0.0
  %920 = vmatpush1.msra.mxu0 0.0
  %921 = vmatprep.subr.mxu0 0.0
  %922 = vmatpush1.msra.mxu0 0.0
  %923 = vmatprep.subr.mxu0 0.0
  %924 = vmatpush1.msra.mxu0 0.0
  %925 = vmatprep.subr.mxu0 0.0
  %926 = vmatpush1.msra.mxu0 0.0
  %927 = vmatprep.subr.mxu0 0.0
  %928 = vmatpush1.msra.mxu0 0.0
  %929 = vmatprep.subr.mxu0 0.0
  %930 = vmatpush1.msra.mxu0 0.0
  %931 = vmatprep.subr.mxu0 0.0
  %932 = vmatpush1.msra.mxu0 0.0
  %933 = vmatprep.subr.mxu0 0.0
  %934 = vmatpush1.msra.mxu0 0.0
  %935 = vmatprep.subr.mxu0 0.0
  %936 = vmatpush1.msra.mxu0 0.0
  %937 = vmatprep.subr.mxu0 0.0
  %938 = vmatpush1.msra.mxu0 0.0
  %939 = vmatprep.mubr.f32.mxu0 0.0
  %940 = vmatmul.mubr.f32.gmra.mrb[0].mxu0 %v873
  %v941 = vpop.f32.mrb[0].mxu0
  %v942 = vadd.f32 %v608, %v941
  %v943 = vpop.f32.mrb[0].mxu0
  %944 = vdwg.mxu0
  %v946 = vsel %vm32, %v477, 0
  %948 = vmatprep.subr.mxu0 0.0
  %949 = vmatpush1.msra.mxu0 %v537
  %950 = vmatprep.subr.mxu0 0.0
  %951 = vmatpush1.msra.mxu0 %v538
  %952 = vmatprep.subr.mxu0 0.0
  %953 = vmatpush1.msra.mxu0 %v539
  %954 = vmatprep.subr.mxu0 0.0
  %955 = vmatpush1.msra.mxu0 %v540
  %956 = vmatprep.subr.mxu0 0.0
  %957 = vmatpush1.msra.mxu0 0.0
  %958 = vmatprep.subr.mxu0 0.0
  %959 = vmatpush1.msra.mxu0 0.0
  %960 = vmatprep.subr.mxu0 0.0
  %961 = vmatpush1.msra.mxu0 0.0
  %962 = vmatprep.subr.mxu0 0.0
  %963 = vmatpush1.msra.mxu0 0.0
  %964 = vmatprep.subr.mxu0 0.0
  %965 = vmatpush1.msra.mxu0 0.0
  %966 = vmatprep.subr.mxu0 0.0
  %967 = vmatpush1.msra.mxu0 0.0
  %968 = vmatprep.subr.mxu0 0.0
  %969 = vmatpush1.msra.mxu0 0.0
  %970 = vmatprep.subr.mxu0 0.0
  %971 = vmatpush1.msra.mxu0 0.0
  %972 = vmatprep.subr.mxu0 0.0
  %973 = vmatpush1.msra.mxu0 0.0
  %974 = vmatprep.subr.mxu0 0.0
  %975 = vmatpush1.msra.mxu0 0.0
  %976 = vmatprep.subr.mxu0 0.0
  %977 = vmatpush1.msra.mxu0 0.0
  %978 = vmatprep.subr.mxu0 0.0
  %979 = vmatpush1.msra.mxu0 0.0
  %980 = vmatprep.subr.mxu0 0.0
  %981 = vmatpush1.msra.mxu0 0.0
  %982 = vmatprep.subr.mxu0 0.0
  %983 = vmatpush1.msra.mxu0 0.0
  %984 = vmatprep.subr.mxu0 0.0
  %985 = vmatpush1.msra.mxu0 0.0
  %986 = vmatprep.subr.mxu0 0.0
  %987 = vmatpush1.msra.mxu0 0.0
  %988 = vmatprep.subr.mxu0 0.0
  %989 = vmatpush1.msra.mxu0 0.0
  %990 = vmatprep.subr.mxu0 0.0
  %991 = vmatpush1.msra.mxu0 0.0
  %992 = vmatprep.subr.mxu0 0.0
  %993 = vmatpush1.msra.mxu0 0.0
  %994 = vmatprep.subr.mxu0 0.0
  %995 = vmatpush1.msra.mxu0 0.0
  %996 = vmatprep.subr.mxu0 0.0
  %997 = vmatpush1.msra.mxu0 0.0
  %998 = vmatprep.subr.mxu0 0.0
  %999 = vmatpush1.msra.mxu0 0.0
  %1000 = vmatprep.subr.mxu0 0.0
  %1001 = vmatpush1.msra.mxu0 0.0
  %1002 = vmatprep.subr.mxu0 0.0
  %1003 = vmatpush1.msra.mxu0 0.0
  %1004 = vmatprep.subr.mxu0 0.0
  %1005 = vmatpush1.msra.mxu0 0.0
  %1006 = vmatprep.subr.mxu0 0.0
  %1007 = vmatpush1.msra.mxu0 0.0
  %1008 = vmatprep.subr.mxu0 0.0
  %1009 = vmatpush1.msra.mxu0 0.0
  %1010 = vmatprep.subr.mxu0 0.0
  %1011 = vmatpush1.msra.mxu0 0.0
  %1012 = vmatprep.mubr.f32.mxu0 0.0
  %1013 = vmatmul.mubr.f32.gmra.mrb[0].mxu0 %v946
  %v1014 = vpop.f32.mrb[0].mxu0
  %v1015 = vadd.f32 %v612, %v1014
  %v1016 = vpop.f32.mrb[0].mxu0
  %1017 = vdwg.mxu0
  %v1019 = vsel %vm32, %v487, 0
  %1021 = vmatprep.subr.mxu0 0.0
  %1022 = vmatpush1.msra.mxu0 %v541
  %1023 = vmatprep.subr.mxu0 0.0
  %1024 = vmatpush1.msra.mxu0 %v542
  %1025 = vmatprep.subr.mxu0 0.0
  %1026 = vmatpush1.msra.mxu0 %v543
  %1027 = vmatprep.subr.mxu0 0.0
  %1028 = vmatpush1.msra.mxu0 %v544
  %1029 = vmatprep.subr.mxu0 0.0
  %1030 = vmatpush1.msra.mxu0 0.0
  %1031 = vmatprep.subr.mxu0 0.0
  %1032 = vmatpush1.msra.mxu0 0.0
  %1033 = vmatprep.subr.mxu0 0.0
  %1034 = vmatpush1.msra.mxu0 0.0
  %1035 = vmatprep.subr.mxu0 0.0
  %1036 = vmatpush1.msra.mxu0 0.0
  %1037 = vmatprep.subr.mxu0 0.0
  %1038 = vmatpush1.msra.mxu0 0.0
  %1039 = vmatprep.subr.mxu0 0.0
  %1040 = vmatpush1.msra.mxu0 0.0
  %1041 = vmatprep.subr.mxu0 0.0
  %1042 = vmatpush1.msra.mxu0 0.0
  %1043 = vmatprep.subr.mxu0 0.0
  %1044 = vmatpush1.msra.mxu0 0.0
  %1045 = vmatprep.subr.mxu0 0.0
  %1046 = vmatpush1.msra.mxu0 0.0
  %1047 = vmatprep.subr.mxu0 0.0
  %1048 = vmatpush1.msra.mxu0 0.0
  %1049 = vmatprep.subr.mxu0 0.0
  %1050 = vmatpush1.msra.mxu0 0.0
  %1051 = vmatprep.subr.mxu0 0.0
  %1052 = vmatpush1.msra.mxu0 0.0
  %1053 = vmatprep.subr.mxu0 0.0
  %1054 = vmatpush1.msra.mxu0 0.0
  %1055 = vmatprep.subr.mxu0 0.0
  %1056 = vmatpush1.msra.mxu0 0.0
  %1057 = vmatprep.subr.mxu0 0.0
  %1058 = vmatpush1.msra.mxu0 0.0
  %1059 = vmatprep.subr.mxu0 0.0
  %1060 = vmatpush1.msra.mxu0 0.0
  %1061 = vmatprep.subr.mxu0 0.0
  %1062 = vmatpush1.msra.mxu0 0.0
  %1063 = vmatprep.subr.mxu0 0.0
  %1064 = vmatpush1.msra.mxu0 0.0
  %1065 = vmatprep.subr.mxu0 0.0
  %1066 = vmatpush1.msra.mxu0 0.0
  %1067 = vmatprep.subr.mxu0 0.0
  %1068 = vmatpush1.msra.mxu0 0.0
  %1069 = vmatprep.subr.mxu0 0.0
  %1070 = vmatpush1.msra.mxu0 0.0
  %1071 = vmatprep.subr.mxu0 0.0
  %1072 = vmatpush1.msra.mxu0 0.0
  %1073 = vmatprep.subr.mxu0 0.0
  %1074 = vmatpush1.msra.mxu0 0.0
  %1075 = vmatprep.subr.mxu0 0.0
  %1076 = vmatpush1.msra.mxu0 0.0
  %1077 = vmatprep.subr.mxu0 0.0
  %1078 = vmatpush1.msra.mxu0 0.0
  %1079 = vmatprep.subr.mxu0 0.0
  %1080 = vmatpush1.msra.mxu0 0.0
  %1081 = vmatprep.subr.mxu0 0.0
  %1082 = vmatpush1.msra.mxu0 0.0
  %1083 = vmatprep.subr.mxu0 0.0
  %1084 = vmatpush1.msra.mxu0 0.0
  %1085 = vmatprep.mubr.f32.mxu0 0.0
  %1086 = vmatmul.mubr.f32.gmra.mrb[0].mxu0 %v1019
  %v1087 = vpop.f32.mrb[0].mxu0
  %v1088 = vadd.f32 %v616, %v1087
  %v1089 = vpop.f32.mrb[0].mxu0
  %1090 = vdwg.mxu0
  %v1092 = vsel %vm32, %v484, 0
  %1094 = vmatprep.subr.mxu0 0.0
  %1095 = vmatpush1.msra.mxu0 %v545
  %1096 = vmatprep.subr.mxu0 0.0
  %1097 = vmatpush1.msra.mxu0 %v546
  %1098 = vmatprep.subr.mxu0 0.0
  %1099 = vmatpush1.msra.mxu0 %v547
  %1100 = vmatprep.subr.mxu0 0.0
  %1101 = vmatpush1.msra.mxu0 %v548
  %1102 = vmatprep.subr.mxu0 0.0
  %1103 = vmatpush1.msra.mxu0 0.0
  %1104 = vmatprep.subr.mxu0 0.0
  %1105 = vmatpush1.msra.mxu0 0.0
  %1106 = vmatprep.subr.mxu0 0.0
  %1107 = vmatpush1.msra.mxu0 0.0
  %1108 = vmatprep.subr.mxu0 0.0
  %1109 = vmatpush1.msra.mxu0 0.0
  %1110 = vmatprep.subr.mxu0 0.0
  %1111 = vmatpush1.msra.mxu0 0.0
  %1112 = vmatprep.subr.mxu0 0.0
  %1113 = vmatpush1.msra.mxu0 0.0
  %1114 = vmatprep.subr.mxu0 0.0
  %1115 = vmatpush1.msra.mxu0 0.0
  %1116 = vmatprep.subr.mxu0 0.0
  %1117 = vmatpush1.msra.mxu0 0.0
  %1118 = vmatprep.subr.mxu0 0.0
  %1119 = vmatpush1.msra.mxu0 0.0
  %1120 = vmatprep.subr.mxu0 0.0
  %1121 = vmatpush1.msra.mxu0 0.0
  %1122 = vmatprep.subr.mxu0 0.0
  %1123 = vmatpush1.msra.mxu0 0.0
  %1124 = vmatprep.subr.mxu0 0.0
  %1125 = vmatpush1.msra.mxu0 0.0
  %1126 = vmatprep.subr.mxu0 0.0
  %1127 = vmatpush1.msra.mxu0 0.0
  %1128 = vmatprep.subr.mxu0 0.0
  %1129 = vmatpush1.msra.mxu0 0.0
  %1130 = vmatprep.subr.mxu0 0.0
  %1131 = vmatpush1.msra.mxu0 0.0
  %1132 = vmatprep.subr.mxu0 0.0
  %1133 = vmatpush1.msra.mxu0 0.0
  %1134 = vmatprep.subr.mxu0 0.0
  %1135 = vmatpush1.msra.mxu0 0.0
  %1136 = vmatprep.subr.mxu0 0.0
  %1137 = vmatpush1.msra.mxu0 0.0
  %1138 = vmatprep.subr.mxu0 0.0
  %1139 = vmatpush1.msra.mxu0 0.0
  %1140 = vmatprep.subr.mxu0 0.0
  %1141 = vmatpush1.msra.mxu0 0.0
  %1142 = vmatprep.subr.mxu0 0.0
  %1143 = vmatpush1.msra.mxu0 0.0
  %1144 = vmatprep.subr.mxu0 0.0
  %1145 = vmatpush1.msra.mxu0 0.0
  %1146 = vmatprep.subr.mxu0 0.0
  %1147 = vmatpush1.msra.mxu0 0.0
  %1148 = vmatprep.subr.mxu0 0.0
  %1149 = vmatpush1.msra.mxu0 0.0
  %1150 = vmatprep.subr.mxu0 0.0
  %1151 = vmatpush1.msra.mxu0 0.0
  %1152 = vmatprep.subr.mxu0 0.0
  %1153 = vmatpush1.msra.mxu0 0.0
  %1154 = vmatprep.subr.mxu0 0.0
  %1155 = vmatpush1.msra.mxu0 0.0
  %1156 = vmatprep.subr.mxu0 0.0
  %1157 = vmatpush1.msra.mxu0 0.0
  %1158 = vmatprep.mubr.f32.mxu0 0.0
  %1159 = vmatmul.mubr.f32.gmra.mrb[0].mxu0 %v1092
  %v1160 = vpop.f32.mrb[0].mxu0
  %v1161 = vadd.f32 %v620, %v1160
  %v1162 = vpop.f32.mrb[0].mxu0
  %1163 = vdwg.mxu0
  %v1165 = vsel %vm32, %v488, 0
  %1167 = vmatprep.subr.mxu0 0.0
  %1168 = vmatpush1.msra.mxu0 %v549
  %1169 = vmatprep.subr.mxu0 0.0
  %1170 = vmatpush1.msra.mxu0 %v550
  %1171 = vmatprep.subr.mxu0 0.0
  %1172 = vmatpush1.msra.mxu0 %v551
  %1173 = vmatprep.subr.mxu0 0.0
  %1174 = vmatpush1.msra.mxu0 %v552
  %1175 = vmatprep.subr.mxu0 0.0
  %1176 = vmatpush1.msra.mxu0 0.0
  %1177 = vmatprep.subr.mxu0 0.0
  %1178 = vmatpush1.msra.mxu0 0.0
  %1179 = vmatprep.subr.mxu0 0.0
  %1180 = vmatpush1.msra.mxu0 0.0
  %1181 = vmatprep.subr.mxu0 0.0
  %1182 = vmatpush1.msra.mxu0 0.0
  %1183 = vmatprep.subr.mxu0 0.0
  %1184 = vmatpush1.msra.mxu0 0.0
  %1185 = vmatprep.subr.mxu0 0.0
  %1186 = vmatpush1.msra.mxu0 0.0
  %1187 = vmatprep.subr.mxu0 0.0
  %1188 = vmatpush1.msra.mxu0 0.0
  %1189 = vmatprep.subr.mxu0 0.0
  %1190 = vmatpush1.msra.mxu0 0.0
  %1191 = vmatprep.subr.mxu0 0.0
  %1192 = vmatpush1.msra.mxu0 0.0
  %1193 = vmatprep.subr.mxu0 0.0
  %1194 = vmatpush1.msra.mxu0 0.0
  %1195 = vmatprep.subr.mxu0 0.0
  %1196 = vmatpush1.msra.mxu0 0.0
  %1197 = vmatprep.subr.mxu0 0.0
  %1198 = vmatpush1.msra.mxu0 0.0
  %1199 = vmatprep.subr.mxu0 0.0
  %1200 = vmatpush1.msra.mxu0 0.0
  %1201 = vmatprep.subr.mxu0 0.0
  %1202 = vmatpush1.msra.mxu0 0.0
  %1203 = vmatprep.subr.mxu0 0.0
  %1204 = vmatpush1.msra.mxu0 0.0
  %1205 = vmatprep.subr.mxu0 0.0
  %1206 = vmatpush1.msra.mxu0 0.0
  %1207 = vmatprep.subr.mxu0 0.0
  %1208 = vmatpush1.msra.mxu0 0.0
  %1209 = vmatprep.subr.mxu0 0.0
  %1210 = vmatpush1.msra.mxu0 0.0
  %1211 = vmatprep.subr.mxu0 0.0
  %1212 = vmatpush1.msra.mxu0 0.0
  %1213 = vmatprep.subr.mxu0 0.0
  %1214 = vmatpush1.msra.mxu0 0.0
  %1215 = vmatprep.subr.mxu0 0.0
  %1216 = vmatpush1.msra.mxu0 0.0
  %1217 = vmatprep.subr.mxu0 0.0
  %1218 = vmatpush1.msra.mxu0 0.0
  %1219 = vmatprep.subr.mxu0 0.0
  %1220 = vmatpush1.msra.mxu0 0.0
  %1221 = vmatprep.subr.mxu0 0.0
  %1222 = vmatpush1.msra.mxu0 0.0
  %1223 = vmatprep.subr.mxu0 0.0
  %1224 = vmatpush1.msra.mxu0 0.0
  %1225 = vmatprep.subr.mxu0 0.0
  %1226 = vmatpush1.msra.mxu0 0.0
  %1227 = vmatprep.subr.mxu0 0.0
  %1228 = vmatpush1.msra.mxu0 0.0
  %1229 = vmatprep.subr.mxu0 0.0
  %1230 = vmatpush1.msra.mxu0 0.0
  %1231 = vmatprep.mubr.f32.mxu0 0.0
  %1232 = vmatmul.mubr.f32.gmra.mrb[0].mxu0 %v1165
  %v1233 = vpop.f32.mrb[0].mxu0
  %v1234 = vadd.f32 %v624, %v1233
  %v1235 = vpop.f32.mrb[0].mxu0
  %1236 = vdwg.mxu0
  %v1238 = vsel %vm32, %v511, 0
  %1240 = vmatprep.subr.mxu0 0.0
  %1241 = vmatpush1.msra.mxu0 %v553
  %1242 = vmatprep.subr.mxu0 0.0
  %1243 = vmatpush1.msra.mxu0 %v554
  %1244 = vmatprep.subr.mxu0 0.0
  %1245 = vmatpush1.msra.mxu0 %v555
  %1246 = vmatprep.subr.mxu0 0.0
  %1247 = vmatpush1.msra.mxu0 %v556
  %1248 = vmatprep.subr.mxu0 0.0
  %1249 = vmatpush1.msra.mxu0 0.0
  %1250 = vmatprep.subr.mxu0 0.0
  %1251 = vmatpush1.msra.mxu0 0.0
  %1252 = vmatprep.subr.mxu0 0.0
  %1253 = vmatpush1.msra.mxu0 0.0
  %1254 = vmatprep.subr.mxu0 0.0
  %1255 = vmatpush1.msra.mxu0 0.0
  %1256 = vmatprep.subr.mxu0 0.0
  %1257 = vmatpush1.msra.mxu0 0.0
  %1258 = vmatprep.subr.mxu0 0.0
  %1259 = vmatpush1.msra.mxu0 0.0
  %1260 = vmatprep.subr.mxu0 0.0
  %1261 = vmatpush1.msra.mxu0 0.0
  %1262 = vmatprep.subr.mxu0 0.0
  %1263 = vmatpush1.msra.mxu0 0.0
  %1264 = vmatprep.subr.mxu0 0.0
  %1265 = vmatpush1.msra.mxu0 0.0
  %1266 = vmatprep.subr.mxu0 0.0
  %1267 = vmatpush1.msra.mxu0 0.0
  %1268 = vmatprep.subr.mxu0 0.0
  %1269 = vmatpush1.msra.mxu0 0.0
  %1270 = vmatprep.subr.mxu0 0.0
  %1271 = vmatpush1.msra.mxu0 0.0
  %1272 = vmatprep.subr.mxu0 0.0
  %1273 = vmatpush1.msra.mxu0 0.0
  %1274 = vmatprep.subr.mxu0 0.0
  %1275 = vmatpush1.msra.mxu0 0.0
  %1276 = vmatprep.subr.mxu0 0.0
  %1277 = vmatpush1.msra.mxu0 0.0
  %1278 = vmatprep.subr.mxu0 0.0
  %1279 = vmatpush1.msra.mxu0 0.0
  %1280 = vmatprep.subr.mxu0 0.0
  %1281 = vmatpush1.msra.mxu0 0.0
  %1282 = vmatprep.subr.mxu0 0.0
  %1283 = vmatpush1.msra.mxu0 0.0
  %1284 = vmatprep.subr.mxu0 0.0
  %1285 = vmatpush1.msra.mxu0 0.0
  %1286 = vmatprep.subr.mxu0 0.0
  %1287 = vmatpush1.msra.mxu0 0.0
  %1288 = vmatprep.subr.mxu0 0.0
  %1289 = vmatpush1.msra.mxu0 0.0
  %1290 = vmatprep.subr.mxu0 0.0
  %1291 = vmatpush1.msra.mxu0 0.0
  %1292 = vmatprep.subr.mxu0 0.0
  %1293 = vmatpush1.msra.mxu0 0.0
  %1294 = vmatprep.subr.mxu0 0.0
  %1295 = vmatpush1.msra.mxu0 0.0
  %1296 = vmatprep.subr.mxu0 0.0
  %1297 = vmatpush1.msra.mxu0 0.0
  %1298 = vmatprep.subr.mxu0 0.0
  %1299 = vmatpush1.msra.mxu0 0.0
  %1300 = vmatprep.subr.mxu0 0.0
  %1301 = vmatpush1.msra.mxu0 0.0
  %1302 = vmatprep.subr.mxu0 0.0
  %1303 = vmatpush1.msra.mxu0 0.0
  %1304 = vmatprep.mubr.f32.mxu0 0.0
  %1305 = vmatmul.mubr.f32.gmra.mrb[0].mxu0 %v1238
  %v1306 = vpop.f32.mrb[0].mxu0
  %v1307 = vadd.f32 %v628, %v1306
  %v1308 = vpop.f32.mrb[0].mxu0
  %1309 = vdwg.mxu0
  %v1311 = vsel %vm32, %v519, 0
  %1313 = vmatprep.subr.mxu0 0.0
  %1314 = vmatpush1.msra.mxu0 %v557
  %1315 = vmatprep.subr.mxu0 0.0
  %1316 = vmatpush1.msra.mxu0 %v558
  %1317 = vmatprep.subr.mxu0 0.0
  %1318 = vmatpush1.msra.mxu0 %v559
  %1319 = vmatprep.subr.mxu0 0.0
  %1320 = vmatpush1.msra.mxu0 %v560
  %1321 = vmatprep.subr.mxu0 0.0
  %1322 = vmatpush1.msra.mxu0 0.0
  %1323 = vmatprep.subr.mxu0 0.0
  %1324 = vmatpush1.msra.mxu0 0.0
  %1325 = vmatprep.subr.mxu0 0.0
  %1326 = vmatpush1.msra.mxu0 0.0
  %1327 = vmatprep.subr.mxu0 0.0
  %1328 = vmatpush1.msra.mxu0 0.0
  %1329 = vmatprep.subr.mxu0 0.0
  %1330 = vmatpush1.msra.mxu0 0.0
  %1331 = vmatprep.subr.mxu0 0.0
  %1332 = vmatpush1.msra.mxu0 0.0
  %1333 = vmatprep.subr.mxu0 0.0
  %1334 = vmatpush1.msra.mxu0 0.0
  %1335 = vmatprep.subr.mxu0 0.0
  %1336 = vmatpush1.msra.mxu0 0.0
  %1337 = vmatprep.subr.mxu0 0.0
  %1338 = vmatpush1.msra.mxu0 0.0
  %1339 = vmatprep.subr.mxu0 0.0
  %1340 = vmatpush1.msra.mxu0 0.0
  %1341 = vmatprep.subr.mxu0 0.0
  %1342 = vmatpush1.msra.mxu0 0.0
  %1343 = vmatprep.subr.mxu0 0.0
  %1344 = vmatpush1.msra.mxu0 0.0
  %1345 = vmatprep.subr.mxu0 0.0
  %1346 = vmatpush1.msra.mxu0 0.0
  %1347 = vmatprep.subr.mxu0 0.0
  %1348 = vmatpush1.msra.mxu0 0.0
  %1349 = vmatprep.subr.mxu0 0.0
  %1350 = vmatpush1.msra.mxu0 0.0
  %1351 = vmatprep.subr.mxu0 0.0
  %1352 = vmatpush1.msra.mxu0 0.0
  %1353 = vmatprep.subr.mxu0 0.0
  %1354 = vmatpush1.msra.mxu0 0.0
  %1355 = vmatprep.subr.mxu0 0.0
  %1356 = vmatpush1.msra.mxu0 0.0
  %1357 = vmatprep.subr.mxu0 0.0
  %1358 = vmatpush1.msra.mxu0 0.0
  %1359 = vmatprep.subr.mxu0 0.0
  %1360 = vmatpush1.msra.mxu0 0.0
  %1361 = vmatprep.subr.mxu0 0.0
  %1362 = vmatpush1.msra.mxu0 0.0
  %1363 = vmatprep.subr.mxu0 0.0
  %1364 = vmatpush1.msra.mxu0 0.0
  %1365 = vmatprep.subr.mxu0 0.0
  %1366 = vmatpush1.msra.mxu0 0.0
  %1367 = vmatprep.subr.mxu0 0.0
  %1368 = vmatpush1.msra.mxu0 0.0
  %1369 = vmatprep.subr.mxu0 0.0
  %1370 = vmatpush1.msra.mxu0 0.0
  %1371 = vmatprep.subr.mxu0 0.0
  %1372 = vmatpush1.msra.mxu0 0.0
  %1373 = vmatprep.subr.mxu0 0.0
  %1374 = vmatpush1.msra.mxu0 0.0
  %1375 = vmatprep.subr.mxu0 0.0
  %1376 = vmatpush1.msra.mxu0 0.0
  %1377 = vmatprep.mubr.f32.mxu0 0.0
  %1378 = vmatmul.mubr.f32.gmra.mrb[0].mxu0 %v1311
  %v1379 = vpop.f32.mrb[0].mxu0
  %v1380 = vadd.f32 %v632, %v1379
  %v1381 = vpop.f32.mrb[0].mxu0
  %1382 = vdwg.mxu0
  %v1384 = vsel %vm32, %v518, 0
  %1386 = vmatprep.subr.mxu0 0.0
  %1387 = vmatpush1.msra.mxu0 %v561
  %1388 = vmatprep.subr.mxu0 0.0
  %1389 = vmatpush1.msra.mxu0 %v562
  %1390 = vmatprep.subr.mxu0 0.0
  %1391 = vmatpush1.msra.mxu0 %v563
  %1392 = vmatprep.subr.mxu0 0.0
  %1393 = vmatpush1.msra.mxu0 %v564
  %1394 = vmatprep.subr.mxu0 0.0
  %1395 = vmatpush1.msra.mxu0 0.0
  %1396 = vmatprep.subr.mxu0 0.0
  %1397 = vmatpush1.msra.mxu0 0.0
  %1398 = vmatprep.subr.mxu0 0.0
  %1399 = vmatpush1.msra.mxu0 0.0
  %1400 = vmatprep.subr.mxu0 0.0
  %1401 = vmatpush1.msra.mxu0 0.0
  %1402 = vmatprep.subr.mxu0 0.0
  %1403 = vmatpush1.msra.mxu0 0.0
  %1404 = vmatprep.subr.mxu0 0.0
  %1405 = vmatpush1.msra.mxu0 0.0
  %1406 = vmatprep.subr.mxu0 0.0
  %1407 = vmatpush1.msra.mxu0 0.0
  %1408 = vmatprep.subr.mxu0 0.0
  %1409 = vmatpush1.msra.mxu0 0.0
  %1410 = vmatprep.subr.mxu0 0.0
  %1411 = vmatpush1.msra.mxu0 0.0
  %1412 = vmatprep.subr.mxu0 0.0
  %1413 = vmatpush1.msra.mxu0 0.0
  %1414 = vmatprep.subr.mxu0 0.0
  %1415 = vmatpush1.msra.mxu0 0.0
  %1416 = vmatprep.subr.mxu0 0.0
  %1417 = vmatpush1.msra.mxu0 0.0
  %1418 = vmatprep.subr.mxu0 0.0
  %1419 = vmatpush1.msra.mxu0 0.0
  %1420 = vmatprep.subr.mxu0 0.0
  %1421 = vmatpush1.msra.mxu0 0.0
  %1422 = vmatprep.subr.mxu0 0.0
  %1423 = vmatpush1.msra.mxu0 0.0
  %1424 = vmatprep.subr.mxu0 0.0
  %1425 = vmatpush1.msra.mxu0 0.0
  %1426 = vmatprep.subr.mxu0 0.0
  %1427 = vmatpush1.msra.mxu0 0.0
  %1428 = vmatprep.subr.mxu0 0.0
  %1429 = vmatpush1.msra.mxu0 0.0
  %1430 = vmatprep.subr.mxu0 0.0
  %1431 = vmatpush1.msra.mxu0 0.0
  %1432 = vmatprep.subr.mxu0 0.0
  %1433 = vmatpush1.msra.mxu0 0.0
  %1434 = vmatprep.subr.mxu0 0.0
  %1435 = vmatpush1.msra.mxu0 0.0
  %1436 = vmatprep.subr.mxu0 0.0
  %1437 = vmatpush1.msra.mxu0 0.0
  %1438 = vmatprep.subr.mxu0 0.0
  %1439 = vmatpush1.msra.mxu0 0.0
  %1440 = vmatprep.subr.mxu0 0.0
  %1441 = vmatpush1.msra.mxu0 0.0
  %1442 = vmatprep.subr.mxu0 0.0
  %1443 = vmatpush1.msra.mxu0 0.0
  %1444 = vmatprep.subr.mxu0 0.0
  %1445 = vmatpush1.msra.mxu0 0.0
  %1446 = vmatprep.subr.mxu0 0.0
  %1447 = vmatpush1.msra.mxu0 0.0
  %1448 = vmatprep.subr.mxu0 0.0
  %1449 = vmatpush1.msra.mxu0 0.0
  %1450 = vmatprep.mubr.f32.mxu0 0.0
  %1451 = vmatmul.mubr.f32.gmra.mrb[0].mxu0 %v1384
  %v1452 = vpop.f32.mrb[0].mxu0
  %v1453 = vadd.f32 %v636, %v1452
  %v1454 = vpop.f32.mrb[0].mxu0
  %1455 = vdwg.mxu0
  %v1457 = vsel %vm32, %v520, 0
  %1459 = vmatprep.subr.mxu0 0.0
  %1460 = vmatpush1.msra.mxu0 %v565
  %1461 = vmatprep.subr.mxu0 0.0
  %1462 = vmatpush1.msra.mxu0 %v566
  %1463 = vmatprep.subr.mxu0 0.0
  %1464 = vmatpush1.msra.mxu0 %v567
  %1465 = vmatprep.subr.mxu0 0.0
  %1466 = vmatpush1.msra.mxu0 %v568
  %1467 = vmatprep.subr.mxu0 0.0
  %1468 = vmatpush1.msra.mxu0 0.0
  %1469 = vmatprep.subr.mxu0 0.0
  %1470 = vmatpush1.msra.mxu0 0.0
  %1471 = vmatprep.subr.mxu0 0.0
  %1472 = vmatpush1.msra.mxu0 0.0
  %1473 = vmatprep.subr.mxu0 0.0
  %1474 = vmatpush1.msra.mxu0 0.0
  %1475 = vmatprep.subr.mxu0 0.0
  %1476 = vmatpush1.msra.mxu0 0.0
  %1477 = vmatprep.subr.mxu0 0.0
  %1478 = vmatpush1.msra.mxu0 0.0
  %1479 = vmatprep.subr.mxu0 0.0
  %1480 = vmatpush1.msra.mxu0 0.0
  %1481 = vmatprep.subr.mxu0 0.0
  %1482 = vmatpush1.msra.mxu0 0.0
  %1483 = vmatprep.subr.mxu0 0.0
  %1484 = vmatpush1.msra.mxu0 0.0
  %1485 = vmatprep.subr.mxu0 0.0
  %1486 = vmatpush1.msra.mxu0 0.0
  %1487 = vmatprep.subr.mxu0 0.0
  %1488 = vmatpush1.msra.mxu0 0.0
  %1489 = vmatprep.subr.mxu0 0.0
  %1490 = vmatpush1.msra.mxu0 0.0
  %1491 = vmatprep.subr.mxu0 0.0
  %1492 = vmatpush1.msra.mxu0 0.0
  %1493 = vmatprep.subr.mxu0 0.0
  %1494 = vmatpush1.msra.mxu0 0.0
  %1495 = vmatprep.subr.mxu0 0.0
  %1496 = vmatpush1.msra.mxu0 0.0
  %1497 = vmatprep.subr.mxu0 0.0
  %1498 = vmatpush1.msra.mxu0 0.0
  %1499 = vmatprep.subr.mxu0 0.0
  %1500 = vmatpush1.msra.mxu0 0.0
  %1501 = vmatprep.subr.mxu0 0.0
  %1502 = vmatpush1.msra.mxu0 0.0
  %1503 = vmatprep.subr.mxu0 0.0
  %1504 = vmatpush1.msra.mxu0 0.0
  %1505 = vmatprep.subr.mxu0 0.0
  %1506 = vmatpush1.msra.mxu0 0.0
  %1507 = vmatprep.subr.mxu0 0.0
  %1508 = vmatpush1.msra.mxu0 0.0
  %1509 = vmatprep.subr.mxu0 0.0
  %1510 = vmatpush1.msra.mxu0 0.0
  %1511 = vmatprep.subr.mxu0 0.0
  %1512 = vmatpush1.msra.mxu0 0.0
  %1513 = vmatprep.subr.mxu0 0.0
  %1514 = vmatpush1.msra.mxu0 0.0
  %1515 = vmatprep.subr.mxu0 0.0
  %1516 = vmatpush1.msra.mxu0 0.0
  %1517 = vmatprep.subr.mxu0 0.0
  %1518 = vmatpush1.msra.mxu0 0.0
  %1519 = vmatprep.subr.mxu0 0.0
  %1520 = vmatpush1.msra.mxu0 0.0
  %1521 = vmatprep.subr.mxu0 0.0
  %1522 = vmatpush1.msra.mxu0 0.0
  %1523 = vmatprep.mubr.f32.mxu0 0.0
  %1524 = vmatmul.mubr.f32.gmra.mrb[0].mxu0 %v1457
  %v1525 = vpop.f32.mrb[0].mxu0
  %v1526 = vadd.f32 %v640, %v1525
  %v1527 = vpop.f32.mrb[0].mxu0
  %1528 = vdwg.mxu0
  %v1529 = vmax.f32 %v723, 0.0
  %v1530 = vmax.f32 %v796, 0.0
  %v1531 = vmax.f32 %v869, 0.0
  %v1532 = vmax.f32 %v942, 0.0
  %v1533 = vmax.f32 %v1015, 0.0
  %v1534 = vmax.f32 %v1088, 0.0
  %v1535 = vmax.f32 %v1161, 0.0
  %v1536 = vmax.f32 %v1234, 0.0
  %v1537 = vmax.f32 %v1307, 0.0
  %v1538 = vmax.f32 %v1380, 0.0
  %v1539 = vmax.f32 %v1453, 0.0
  %v1540 = vmax.f32 %v1526, 0.0
  %v1541 = vld [vmem:[%s5] sm:$0xff]
  %v1542 = vld [vmem:[%s5 + $0x8] sm:$0xff]
  %v1543 = vld [vmem:[%s5 + $0x10] sm:$0xff]
  %v1544 = vld [vmem:[%s5 + $0x18] sm:$0xff]
  %v1545 = vld [vmem:[%s5 + $0x20] sm:$0xff]
  %v1546 = vld [vmem:[%s5 + $0x28] sm:$0xff]
  %v1547 = vld [vmem:[%s5 + $0x30] sm:$0xff]
  %v1548 = vld [vmem:[%s5 + $0x38] sm:$0xff]
  %v1549 = vld [vmem:[%s5 + $0x40] sm:$0xff]
  %v1550 = vld [vmem:[%s5 + $0x48] sm:$0xff]
  %v1551 = vld [vmem:[%s5 + $0x50] sm:$0xff]
  %v1552 = vld [vmem:[%s5 + $0x58] sm:$0xff]
  %v1553 = vld [vmem:[%s5 + $0x60] sm:$0xff]
  %v1554 = vld [vmem:[%s5 + $0x68] sm:$0xff]
  %v1555 = vld [vmem:[%s5 + $0x70] sm:$0xff]
  %v1556 = vld [vmem:[%s5 + $0x78] sm:$0xff]
  %v1557 = vld [vmem:[%s5 + $0x80] sm:$0xff]
  %v1558 = vld [vmem:[%s5 + $0x88] sm:$0xff]
  %v1559 = vld [vmem:[%s5 + $0x90] sm:$0xff]
  %v1560 = vld [vmem:[%s5 + $0x98] sm:$0xff]
  %v1561 = vld [vmem:[%s5 + $0xa0] sm:$0xff]
  %v1562 = vld [vmem:[%s5 + $0xa8] sm:$0xff]
  %v1563 = vld [vmem:[%s5 + $0xb0] sm:$0xff]
  %v1564 = vld [vmem:[%s5 + $0xb8] sm:$0xff]
  %v1565 = vld [vmem:[%s5 + $0xc0] sm:$0xff]
  %v1566 = vld [vmem:[%s5 + $0xc8] sm:$0xff]
  %v1567 = vld [vmem:[%s5 + $0xd0] sm:$0xff]
  %v1568 = vld [vmem:[%s5 + $0xd8] sm:$0xff]
  %v1569 = vld [vmem:[%s5 + $0xe0] sm:$0xff]
  %v1570 = vld [vmem:[%s5 + $0xe8] sm:$0xff]
  %v1571 = vld [vmem:[%s5 + $0xf0] sm:$0xff]
  %v1572 = vld [vmem:[%s5 + $0xf8] sm:$0xff]
  %v1573 = vld [vmem:[%s5 + $0x100] sm:$0xff]
  %v1574 = vld [vmem:[%s5 + $0x108] sm:$0xff]
  %v1575 = vld [vmem:[%s5 + $0x110] sm:$0xff]
  %v1576 = vld [vmem:[%s5 + $0x118] sm:$0xff]
  %v1577 = vld [vmem:[%s5 + $0x120] sm:$0xff]
  %v1578 = vld [vmem:[%s5 + $0x128] sm:$0xff]
  %v1579 = vld [vmem:[%s5 + $0x130] sm:$0xff]
  %v1580 = vld [vmem:[%s5 + $0x138] sm:$0xff]
  %v1581 = vld [vmem:[%s5 + $0x140] sm:$0xff]
  %v1582 = vld [vmem:[%s5 + $0x148] sm:$0xff]
  %v1583 = vld [vmem:[%s5 + $0x150] sm:$0xff]
  %v1584 = vld [vmem:[%s5 + $0x158] sm:$0xff]
  %v1585 = vld [vmem:[%s5 + $0x160] sm:$0xff]
  %v1586 = vld [vmem:[%s5 + $0x168] sm:$0xff]
  %v1587 = vld [vmem:[%s5 + $0x170] sm:$0xff]
  %v1588 = vld [vmem:[%s5 + $0x178] sm:$0xff]
  %v1589 = vld [vmem:[%s6] sm:$0x1]
  %v1590 = vld [vmem:[%s6 + $0x1] sm:$0x1]
  %v1591 = vld [vmem:[%s6 + $0x2] sm:$0x1]
  %v1592 = vld [vmem:[%s6 + $0x3] sm:$0x1]
  %v1593 = vld [vmem:[%s6 + $0x4] sm:$0x1]
  %v1594 = vld [vmem:[%s6 + $0x5] sm:$0x1]
  %v1595 = vld [vmem:[%s6 + $0x6] sm:$0x1]
  %v1596 = vld [vmem:[%s6 + $0x7] sm:$0x1]
  %v1597 = vld [vmem:[%s6 + $0x8] sm:$0x1]
  %v1598 = vld [vmem:[%s6 + $0x9] sm:$0x1]
  %v1599 = vld [vmem:[%s6 + $0xa] sm:$0x1]
  %v1600 = vld [vmem:[%s6 + $0xb] sm:$0x1]
  %v1613 = vlaneseq
  %v1614 = vshrl.u32 %v1613, 7
  %v1615 = vsub.s32 0, %v1614
  %v1616 = vrot.slane %v1589, %v1615
  %v1617 = vlaneseq
  %v1618 = vshrl.u32 %v1617, 7
  %v1619 = vsub.s32 0, %v1618
  %v1620 = vrot.slane %v1590, %v1619
  %v1621 = vlaneseq
  %v1622 = vshrl.u32 %v1621, 7
  %v1623 = vsub.s32 0, %v1622
  %v1624 = vrot.slane %v1591, %v1623
  %v1625 = vlaneseq
  %v1626 = vshrl.u32 %v1625, 7
  %v1627 = vsub.s32 0, %v1626
  %v1628 = vrot.slane %v1592, %v1627
  %v1629 = vlaneseq
  %v1630 = vshrl.u32 %v1629, 7
  %v1631 = vsub.s32 0, %v1630
  %v1632 = vrot.slane %v1593, %v1631
  %v1633 = vlaneseq
  %v1634 = vshrl.u32 %v1633, 7
  %v1635 = vsub.s32 0, %v1634
  %v1636 = vrot.slane %v1594, %v1635
  %v1637 = vlaneseq
  %v1638 = vshrl.u32 %v1637, 7
  %v1639 = vsub.s32 0, %v1638
  %v1640 = vrot.slane %v1595, %v1639
  %v1641 = vlaneseq
  %v1642 = vshrl.u32 %v1641, 7
  %v1643 = vsub.s32 0, %v1642
  %v1644 = vrot.slane %v1596, %v1643
  %v1645 = vlaneseq
  %v1646 = vshrl.u32 %v1645, 7
  %v1647 = vsub.s32 0, %v1646
  %v1648 = vrot.slane %v1597, %v1647
  %v1649 = vlaneseq
  %v1650 = vshrl.u32 %v1649, 7
  %v1651 = vsub.s32 0, %v1650
  %v1652 = vrot.slane %v1598, %v1651
  %v1653 = vlaneseq
  %v1654 = vshrl.u32 %v1653, 7
  %v1655 = vsub.s32 0, %v1654
  %v1656 = vrot.slane %v1599, %v1655
  %v1657 = vlaneseq
  %v1658 = vshrl.u32 %v1657, 7
  %v1659 = vsub.s32 0, %v1658
  %v1660 = vrot.slane %v1600, %v1659
  %v1674 = vsel %vm32, %v1529, 0
  %1676 = vmatprep.subr.mxu0 0.0
  %1677 = vmatpush1.msra.mxu0 %v1541
  %1678 = vmatprep.subr.mxu0 0.0
  %1679 = vmatpush1.msra.mxu0 %v1542
  %1680 = vmatprep.subr.mxu0 0.0
  %1681 = vmatpush1.msra.mxu0 %v1543
  %1682 = vmatprep.subr.mxu0 0.0
  %1683 = vmatpush1.msra.mxu0 %v1544
  %1684 = vmatprep.subr.mxu0 0.0
  %1685 = vmatpush1.msra.mxu0 0.0
  %1686 = vmatprep.subr.mxu0 0.0
  %1687 = vmatpush1.msra.mxu0 0.0
  %1688 = vmatprep.subr.mxu0 0.0
  %1689 = vmatpush1.msra.mxu0 0.0
  %1690 = vmatprep.subr.mxu0 0.0
  %1691 = vmatpush1.msra.mxu0 0.0
  %1692 = vmatprep.subr.mxu0 0.0
  %1693 = vmatpush1.msra.mxu0 0.0
  %1694 = vmatprep.subr.mxu0 0.0
  %1695 = vmatpush1.msra.mxu0 0.0
  %1696 = vmatprep.subr.mxu0 0.0
  %1697 = vmatpush1.msra.mxu0 0.0
  %1698 = vmatprep.subr.mxu0 0.0
  %1699 = vmatpush1.msra.mxu0 0.0
  %1700 = vmatprep.subr.mxu0 0.0
  %1701 = vmatpush1.msra.mxu0 0.0
  %1702 = vmatprep.subr.mxu0 0.0
  %1703 = vmatpush1.msra.mxu0 0.0
  %1704 = vmatprep.subr.mxu0 0.0
  %1705 = vmatpush1.msra.mxu0 0.0
  %1706 = vmatprep.subr.mxu0 0.0
  %1707 = vmatpush1.msra.mxu0 0.0
  %1708 = vmatprep.subr.mxu0 0.0
  %1709 = vmatpush1.msra.mxu0 0.0
  %1710 = vmatprep.subr.mxu0 0.0
  %1711 = vmatpush1.msra.mxu0 0.0
  %1712 = vmatprep.subr.mxu0 0.0
  %1713 = vmatpush1.msra.mxu0 0.0
  %1714 = vmatprep.subr.mxu0 0.0
  %1715 = vmatpush1.msra.mxu0 0.0
  %1716 = vmatprep.subr.mxu0 0.0
  %1717 = vmatpush1.msra.mxu0 0.0
  %1718 = vmatprep.subr.mxu0 0.0
  %1719 = vmatpush1.msra.mxu0 0.0
  %1720 = vmatprep.subr.mxu0 0.0
  %1721 = vmatpush1.msra.mxu0 0.0
  %1722 = vmatprep.subr.mxu0 0.0
  %1723 = vmatpush1.msra.mxu0 0.0
  %1724 = vmatprep.subr.mxu0 0.0
  %1725 = vmatpush1.msra.mxu0 0.0
  %1726 = vmatprep.subr.mxu0 0.0
  %1727 = vmatpush1.msra.mxu0 0.0
  %1728 = vmatprep.subr.mxu0 0.0
  %1729 = vmatpush1.msra.mxu0 0.0
  %1730 = vmatprep.subr.mxu0 0.0
  %1731 = vmatpush1.msra.mxu0 0.0
  %1732 = vmatprep.subr.mxu0 0.0
  %1733 = vmatpush1.msra.mxu0 0.0
  %1734 = vmatprep.subr.mxu0 0.0
  %1735 = vmatpush1.msra.mxu0 0.0
  %1736 = vmatprep.subr.mxu0 0.0
  %1737 = vmatpush1.msra.mxu0 0.0
  %1738 = vmatprep.subr.mxu0 0.0
  %1739 = vmatpush1.msra.mxu0 0.0
  %1740 = vmatprep.mubr.f32.mxu0 0.0
  %1741 = vmatmul.mubr.f32.gmra.mrb[0].mxu0 %v1674
  %v1742 = vpop.f32.mrb[0].mxu0
  %v1743 = vadd.f32 %v1616, %v1742
  %v1744 = vpop.f32.mrb[0].mxu0
  %1745 = vdwg.mxu0
  %v1747 = vsel %vm32, %v1530, 0
  %1749 = vmatprep.subr.mxu0 0.0
  %1750 = vmatpush1.msra.mxu0 %v1545
  %1751 = vmatprep.subr.mxu0 0.0
  %1752 = vmatpush1.msra.mxu0 %v1546
  %1753 = vmatprep.subr.mxu0 0.0
  %1754 = vmatpush1.msra.mxu0 %v1547
  %1755 = vmatprep.subr.mxu0 0.0
  %1756 = vmatpush1.msra.mxu0 %v1548
  %1757 = vmatprep.subr.mxu0 0.0
  %1758 = vmatpush1.msra.mxu0 0.0
  %1759 = vmatprep.subr.mxu0 0.0
  %1760 = vmatpush1.msra.mxu0 0.0
  %1761 = vmatprep.subr.mxu0 0.0
  %1762 = vmatpush1.msra.mxu0 0.0
  %1763 = vmatprep.subr.mxu0 0.0
  %1764 = vmatpush1.msra.mxu0 0.0
  %1765 = vmatprep.subr.mxu0 0.0
  %1766 = vmatpush1.msra.mxu0 0.0
  %1767 = vmatprep.subr.mxu0 0.0
  %1768 = vmatpush1.msra.mxu0 0.0
  %1769 = vmatprep.subr.mxu0 0.0
  %1770 = vmatpush1.msra.mxu0 0.0
  %1771 = vmatprep.subr.mxu0 0.0
  %1772 = vmatpush1.msra.mxu0 0.0
  %1773 = vmatprep.subr.mxu0 0.0
  %1774 = vmatpush1.msra.mxu0 0.0
  %1775 = vmatprep.subr.mxu0 0.0
  %1776 = vmatpush1.msra.mxu0 0.0
  %1777 = vmatprep.subr.mxu0 0.0
  %1778 = vmatpush1.msra.mxu0 0.0
  %1779 = vmatprep.subr.mxu0 0.0
  %1780 = vmatpush1.msra.mxu0 0.0
  %1781 = vmatprep.subr.mxu0 0.0
  %1782 = vmatpush1.msra.mxu0 0.0
  %1783 = vmatprep.subr.mxu0 0.0
  %1784 = vmatpush1.msra.mxu0 0.0
  %1785 = vmatprep.subr.mxu0 0.0
  %1786 = vmatpush1.msra.mxu0 0.0
  %1787 = vmatprep.subr.mxu0 0.0
  %1788 = vmatpush1.msra.mxu0 0.0
  %1789 = vmatprep.subr.mxu0 0.0
  %1790 = vmatpush1.msra.mxu0 0.0
  %1791 = vmatprep.subr.mxu0 0.0
  %1792 = vmatpush1.msra.mxu0 0.0
  %1793 = vmatprep.subr.mxu0 0.0
  %1794 = vmatpush1.msra.mxu0 0.0
  %1795 = vmatprep.subr.mxu0 0.0
  %1796 = vmatpush1.msra.mxu0 0.0
  %1797 = vmatprep.subr.mxu0 0.0
  %1798 = vmatpush1.msra.mxu0 0.0
  %1799 = vmatprep.subr.mxu0 0.0
  %1800 = vmatpush1.msra.mxu0 0.0
  %1801 = vmatprep.subr.mxu0 0.0
  %1802 = vmatpush1.msra.mxu0 0.0
  %1803 = vmatprep.subr.mxu0 0.0
  %1804 = vmatpush1.msra.mxu0 0.0
  %1805 = vmatprep.subr.mxu0 0.0
  %1806 = vmatpush1.msra.mxu0 0.0
  %1807 = vmatprep.subr.mxu0 0.0
  %1808 = vmatpush1.msra.mxu0 0.0
  %1809 = vmatprep.subr.mxu0 0.0
  %1810 = vmatpush1.msra.mxu0 0.0
  %1811 = vmatprep.subr.mxu0 0.0
  %1812 = vmatpush1.msra.mxu0 0.0
  %1813 = vmatprep.mubr.f32.mxu0 0.0
  %1814 = vmatmul.mubr.f32.gmra.mrb[0].mxu0 %v1747
  %v1815 = vpop.f32.mrb[0].mxu0
  %v1816 = vadd.f32 %v1620, %v1815
  %v1817 = vpop.f32.mrb[0].mxu0
  %1818 = vdwg.mxu0
  %v1820 = vsel %vm32, %v1531, 0
  %1822 = vmatprep.subr.mxu0 0.0
  %1823 = vmatpush1.msra.mxu0 %v1549
  %1824 = vmatprep.subr.mxu0 0.0
  %1825 = vmatpush1.msra.mxu0 %v1550
  %1826 = vmatprep.subr.mxu0 0.0
  %1827 = vmatpush1.msra.mxu0 %v1551
  %1828 = vmatprep.subr.mxu0 0.0
  %1829 = vmatpush1.msra.mxu0 %v1552
  %1830 = vmatprep.subr.mxu0 0.0
  %1831 = vmatpush1.msra.mxu0 0.0
  %1832 = vmatprep.subr.mxu0 0.0
  %1833 = vmatpush1.msra.mxu0 0.0
  %1834 = vmatprep.subr.mxu0 0.0
  %1835 = vmatpush1.msra.mxu0 0.0
  %1836 = vmatprep.subr.mxu0 0.0
  %1837 = vmatpush1.msra.mxu0 0.0
  %1838 = vmatprep.subr.mxu0 0.0
  %1839 = vmatpush1.msra.mxu0 0.0
  %1840 = vmatprep.subr.mxu0 0.0
  %1841 = vmatpush1.msra.mxu0 0.0
  %1842 = vmatprep.subr.mxu0 0.0
  %1843 = vmatpush1.msra.mxu0 0.0
  %1844 = vmatprep.subr.mxu0 0.0
  %1845 = vmatpush1.msra.mxu0 0.0
  %1846 = vmatprep.subr.mxu0 0.0
  %1847 = vmatpush1.msra.mxu0 0.0
  %1848 = vmatprep.subr.mxu0 0.0
  %1849 = vmatpush1.msra.mxu0 0.0
  %1850 = vmatprep.subr.mxu0 0.0
  %1851 = vmatpush1.msra.mxu0 0.0
  %1852 = vmatprep.subr.mxu0 0.0
  %1853 = vmatpush1.msra.mxu0 0.0
  %1854 = vmatprep.subr.mxu0 0.0
  %1855 = vmatpush1.msra.mxu0 0.0
  %1856 = vmatprep.subr.mxu0 0.0
  %1857 = vmatpush1.msra.mxu0 0.0
  %1858 = vmatprep.subr.mxu0 0.0
  %1859 = vmatpush1.msra.mxu0 0.0
  %1860 = vmatprep.subr.mxu0 0.0
  %1861 = vmatpush1.msra.mxu0 0.0
  %1862 = vmatprep.subr.mxu0 0.0
  %1863 = vmatpush1.msra.mxu0 0.0
  %1864 = vmatprep.subr.mxu0 0.0
  %1865 = vmatpush1.msra.mxu0 0.0
  %1866 = vmatprep.subr.mxu0 0.0
  %1867 = vmatpush1.msra.mxu0 0.0
  %1868 = vmatprep.subr.mxu0 0.0
  %1869 = vmatpush1.msra.mxu0 0.0
  %1870 = vmatprep.subr.mxu0 0.0
  %1871 = vmatpush1.msra.mxu0 0.0
  %1872 = vmatprep.subr.mxu0 0.0
  %1873 = vmatpush1.msra.mxu0 0.0
  %1874 = vmatprep.subr.mxu0 0.0
  %1875 = vmatpush1.msra.mxu0 0.0
  %1876 = vmatprep.subr.mxu0 0.0
  %1877 = vmatpush1.msra.mxu0 0.0
  %1878 = vmatprep.subr.mxu0 0.0
  %1879 = vmatpush1.msra.mxu0 0.0
  %1880 = vmatprep.subr.mxu0 0.0
  %1881 = vmatpush1.msra.mxu0 0.0
  %1882 = vmatprep.subr.mxu0 0.0
  %1883 = vmatpush1.msra.mxu0 0.0
  %1884 = vmatprep.subr.mxu0 0.0
  %1885 = vmatpush1.msra.mxu0 0.0
  %1886 = vmatprep.mubr.f32.mxu0 0.0
  %1887 = vmatmul.mubr.f32.gmra.mrb[0].mxu0 %v1820
  %v1888 = vpop.f32.mrb[0].mxu0
  %v1889 = vadd.f32 %v1624, %v1888
  %v1890 = vpop.f32.mrb[0].mxu0
  %1891 = vdwg.mxu0
  %v1893 = vsel %vm32, %v1532, 0
  %1895 = vmatprep.subr.mxu0 0.0
  %1896 = vmatpush1.msra.mxu0 %v1553
  %1897 = vmatprep.subr.mxu0 0.0
  %1898 = vmatpush1.msra.mxu0 %v1554
  %1899 = vmatprep.subr.mxu0 0.0
  %1900 = vmatpush1.msra.mxu0 %v1555
  %1901 = vmatprep.subr.mxu0 0.0
  %1902 = vmatpush1.msra.mxu0 %v1556
  %1903 = vmatprep.subr.mxu0 0.0
  %1904 = vmatpush1.msra.mxu0 0.0
  %1905 = vmatprep.subr.mxu0 0.0
  %1906 = vmatpush1.msra.mxu0 0.0
  %1907 = vmatprep.subr.mxu0 0.0
  %1908 = vmatpush1.msra.mxu0 0.0
  %1909 = vmatprep.subr.mxu0 0.0
  %1910 = vmatpush1.msra.mxu0 0.0
  %1911 = vmatprep.subr.mxu0 0.0
  %1912 = vmatpush1.msra.mxu0 0.0
  %1913 = vmatprep.subr.mxu0 0.0
  %1914 = vmatpush1.msra.mxu0 0.0
  %1915 = vmatprep.subr.mxu0 0.0
  %1916 = vmatpush1.msra.mxu0 0.0
  %1917 = vmatprep.subr.mxu0 0.0
  %1918 = vmatpush1.msra.mxu0 0.0
  %1919 = vmatprep.subr.mxu0 0.0
  %1920 = vmatpush1.msra.mxu0 0.0
  %1921 = vmatprep.subr.mxu0 0.0
  %1922 = vmatpush1.msra.mxu0 0.0
  %1923 = vmatprep.subr.mxu0 0.0
  %1924 = vmatpush1.msra.mxu0 0.0
  %1925 = vmatprep.subr.mxu0 0.0
  %1926 = vmatpush1.msra.mxu0 0.0
  %1927 = vmatprep.subr.mxu0 0.0
  %1928 = vmatpush1.msra.mxu0 0.0
  %1929 = vmatprep.subr.mxu0 0.0
  %1930 = vmatpush1.msra.mxu0 0.0
  %1931 = vmatprep.subr.mxu0 0.0
  %1932 = vmatpush1.msra.mxu0 0.0
  %1933 = vmatprep.subr.mxu0 0.0
  %1934 = vmatpush1.msra.mxu0 0.0
  %1935 = vmatprep.subr.mxu0 0.0
  %1936 = vmatpush1.msra.mxu0 0.0
  %1937 = vmatprep.subr.mxu0 0.0
  %1938 = vmatpush1.msra.mxu0 0.0
  %1939 = vmatprep.subr.mxu0 0.0
  %1940 = vmatpush1.msra.mxu0 0.0
  %1941 = vmatprep.subr.mxu0 0.0
  %1942 = vmatpush1.msra.mxu0 0.0
  %1943 = vmatprep.subr.mxu0 0.0
  %1944 = vmatpush1.msra.mxu0 0.0
  %1945 = vmatprep.subr.mxu0 0.0
  %1946 = vmatpush1.msra.mxu0 0.0
  %1947 = vmatprep.subr.mxu0 0.0
  %1948 = vmatpush1.msra.mxu0 0.0
  %1949 = vmatprep.subr.mxu0 0.0
  %1950 = vmatpush1.msra.mxu0 0.0
  %1951 = vmatprep.subr.mxu0 0.0
  %1952 = vmatpush1.msra.mxu0 0.0
  %1953 = vmatprep.subr.mxu0 0.0
  %1954 = vmatpush1.msra.mxu0 0.0
  %1955 = vmatprep.subr.mxu0 0.0
  %1956 = vmatpush1.msra.mxu0 0.0
  %1957 = vmatprep.subr.mxu0 0.0
  %1958 = vmatpush1.msra.mxu0 0.0
  %1959 = vmatprep.mubr.f32.mxu0 0.0
  %1960 = vmatmul.mubr.f32.gmra.mrb[0].mxu0 %v1893
  %v1961 = vpop.f32.mrb[0].mxu0
  %v1962 = vadd.f32 %v1628, %v1961
  %v1963 = vpop.f32.mrb[0].mxu0
  %1964 = vdwg.mxu0
  %v1966 = vsel %vm32, %v1533, 0
  %1968 = vmatprep.subr.mxu0 0.0
  %1969 = vmatpush1.msra.mxu0 %v1557
  %1970 = vmatprep.subr.mxu0 0.0
  %1971 = vmatpush1.msra.mxu0 %v1558
  %1972 = vmatprep.subr.mxu0 0.0
  %1973 = vmatpush1.msra.mxu0 %v1559
  %1974 = vmatprep.subr.mxu0 0.0
  %1975 = vmatpush1.msra.mxu0 %v1560
  %1976 = vmatprep.subr.mxu0 0.0
  %1977 = vmatpush1.msra.mxu0 0.0
  %1978 = vmatprep.subr.mxu0 0.0
  %1979 = vmatpush1.msra.mxu0 0.0
  %1980 = vmatprep.subr.mxu0 0.0
  %1981 = vmatpush1.msra.mxu0 0.0
  %1982 = vmatprep.subr.mxu0 0.0
  %1983 = vmatpush1.msra.mxu0 0.0
  %1984 = vmatprep.subr.mxu0 0.0
  %1985 = vmatpush1.msra.mxu0 0.0
  %1986 = vmatprep.subr.mxu0 0.0
  %1987 = vmatpush1.msra.mxu0 0.0
  %1988 = vmatprep.subr.mxu0 0.0
  %1989 = vmatpush1.msra.mxu0 0.0
  %1990 = vmatprep.subr.mxu0 0.0
  %1991 = vmatpush1.msra.mxu0 0.0
  %1992 = vmatprep.subr.mxu0 0.0
  %1993 = vmatpush1.msra.mxu0 0.0
  %1994 = vmatprep.subr.mxu0 0.0
  %1995 = vmatpush1.msra.mxu0 0.0
  %1996 = vmatprep.subr.mxu0 0.0
  %1997 = vmatpush1.msra.mxu0 0.0
  %1998 = vmatprep.subr.mxu0 0.0
  %1999 = vmatpush1.msra.mxu0 0.0
  %2000 = vmatprep.subr.mxu0 0.0
  %2001 = vmatpush1.msra.mxu0 0.0
  %2002 = vmatprep.subr.mxu0 0.0
  %2003 = vmatpush1.msra.mxu0 0.0
  %2004 = vmatprep.subr.mxu0 0.0
  %2005 = vmatpush1.msra.mxu0 0.0
  %2006 = vmatprep.subr.mxu0 0.0
  %2007 = vmatpush1.msra.mxu0 0.0
  %2008 = vmatprep.subr.mxu0 0.0
  %2009 = vmatpush1.msra.mxu0 0.0
  %2010 = vmatprep.subr.mxu0 0.0
  %2011 = vmatpush1.msra.mxu0 0.0
  %2012 = vmatprep.subr.mxu0 0.0
  %2013 = vmatpush1.msra.mxu0 0.0
  %2014 = vmatprep.subr.mxu0 0.0
  %2015 = vmatpush1.msra.mxu0 0.0
  %2016 = vmatprep.subr.mxu0 0.0
  %2017 = vmatpush1.msra.mxu0 0.0
  %2018 = vmatprep.subr.mxu0 0.0
  %2019 = vmatpush1.msra.mxu0 0.0
  %2020 = vmatprep.subr.mxu0 0.0
  %2021 = vmatpush1.msra.mxu0 0.0
  %2022 = vmatprep.subr.mxu0 0.0
  %2023 = vmatpush1.msra.mxu0 0.0
  %2024 = vmatprep.subr.mxu0 0.0
  %2025 = vmatpush1.msra.mxu0 0.0
  %2026 = vmatprep.subr.mxu0 0.0
  %2027 = vmatpush1.msra.mxu0 0.0
  %2028 = vmatprep.subr.mxu0 0.0
  %2029 = vmatpush1.msra.mxu0 0.0
  %2030 = vmatprep.subr.mxu0 0.0
  %2031 = vmatpush1.msra.mxu0 0.0
  %2032 = vmatprep.mubr.f32.mxu0 0.0
  %2033 = vmatmul.mubr.f32.gmra.mrb[0].mxu0 %v1966
  %v2034 = vpop.f32.mrb[0].mxu0
  %v2035 = vadd.f32 %v1632, %v2034
  %v2036 = vpop.f32.mrb[0].mxu0
  %2037 = vdwg.mxu0
  %v2039 = vsel %vm32, %v1534, 0
  %2041 = vmatprep.subr.mxu0 0.0
  %2042 = vmatpush1.msra.mxu0 %v1561
  %2043 = vmatprep.subr.mxu0 0.0
  %2044 = vmatpush1.msra.mxu0 %v1562
  %2045 = vmatprep.subr.mxu0 0.0
  %2046 = vmatpush1.msra.mxu0 %v1563
  %2047 = vmatprep.subr.mxu0 0.0
  %2048 = vmatpush1.msra.mxu0 %v1564
  %2049 = vmatprep.subr.mxu0 0.0
  %2050 = vmatpush1.msra.mxu0 0.0
  %2051 = vmatprep.subr.mxu0 0.0
  %2052 = vmatpush1.msra.mxu0 0.0
  %2053 = vmatprep.subr.mxu0 0.0
  %2054 = vmatpush1.msra.mxu0 0.0
  %2055 = vmatprep.subr.mxu0 0.0
  %2056 = vmatpush1.msra.mxu0 0.0
  %2057 = vmatprep.subr.mxu0 0.0
  %2058 = vmatpush1.msra.mxu0 0.0
  %2059 = vmatprep.subr.mxu0 0.0
  %2060 = vmatpush1.msra.mxu0 0.0
  %2061 = vmatprep.subr.mxu0 0.0
  %2062 = vmatpush1.msra.mxu0 0.0
  %2063 = vmatprep.subr.mxu0 0.0
  %2064 = vmatpush1.msra.mxu0 0.0
  %2065 = vmatprep.subr.mxu0 0.0
  %2066 = vmatpush1.msra.mxu0 0.0
  %2067 = vmatprep.subr.mxu0 0.0
  %2068 = vmatpush1.msra.mxu0 0.0
  %2069 = vmatprep.subr.mxu0 0.0
  %2070 = vmatpush1.msra.mxu0 0.0
  %2071 = vmatprep.subr.mxu0 0.0
  %2072 = vmatpush1.msra.mxu0 0.0
  %2073 = vmatprep.subr.mxu0 0.0
  %2074 = vmatpush1.msra.mxu0 0.0
  %2075 = vmatprep.subr.mxu0 0.0
  %2076 = vmatpush1.msra.mxu0 0.0
  %2077 = vmatprep.subr.mxu0 0.0
  %2078 = vmatpush1.msra.mxu0 0.0
  %2079 = vmatprep.subr.mxu0 0.0
  %2080 = vmatpush1.msra.mxu0 0.0
  %2081 = vmatprep.subr.mxu0 0.0
  %2082 = vmatpush1.msra.mxu0 0.0
  %2083 = vmatprep.subr.mxu0 0.0
  %2084 = vmatpush1.msra.mxu0 0.0
  %2085 = vmatprep.subr.mxu0 0.0
  %2086 = vmatpush1.msra.mxu0 0.0
  %2087 = vmatprep.subr.mxu0 0.0
  %2088 = vmatpush1.msra.mxu0 0.0
  %2089 = vmatprep.subr.mxu0 0.0
  %2090 = vmatpush1.msra.mxu0 0.0
  %2091 = vmatprep.subr.mxu0 0.0
  %2092 = vmatpush1.msra.mxu0 0.0
  %2093 = vmatprep.subr.mxu0 0.0
  %2094 = vmatpush1.msra.mxu0 0.0
  %2095 = vmatprep.subr.mxu0 0.0
  %2096 = vmatpush1.msra.mxu0 0.0
  %2097 = vmatprep.subr.mxu0 0.0
  %2098 = vmatpush1.msra.mxu0 0.0
  %2099 = vmatprep.subr.mxu0 0.0
  %2100 = vmatpush1.msra.mxu0 0.0
  %2101 = vmatprep.subr.mxu0 0.0
  %2102 = vmatpush1.msra.mxu0 0.0
  %2103 = vmatprep.subr.mxu0 0.0
  %2104 = vmatpush1.msra.mxu0 0.0
  %2105 = vmatprep.mubr.f32.mxu0 0.0
  %2106 = vmatmul.mubr.f32.gmra.mrb[0].mxu0 %v2039
  %v2107 = vpop.f32.mrb[0].mxu0
  %v2108 = vadd.f32 %v1636, %v2107
  %v2109 = vpop.f32.mrb[0].mxu0
  %2110 = vdwg.mxu0
  %v2112 = vsel %vm32, %v1535, 0
  %2114 = vmatprep.subr.mxu0 0.0
  %2115 = vmatpush1.msra.mxu0 %v1565
  %2116 = vmatprep.subr.mxu0 0.0
  %2117 = vmatpush1.msra.mxu0 %v1566
  %2118 = vmatprep.subr.mxu0 0.0
  %2119 = vmatpush1.msra.mxu0 %v1567
  %2120 = vmatprep.subr.mxu0 0.0
  %2121 = vmatpush1.msra.mxu0 %v1568
  %2122 = vmatprep.subr.mxu0 0.0
  %2123 = vmatpush1.msra.mxu0 0.0
  %2124 = vmatprep.subr.mxu0 0.0
  %2125 = vmatpush1.msra.mxu0 0.0
  %2126 = vmatprep.subr.mxu0 0.0
  %2127 = vmatpush1.msra.mxu0 0.0
  %2128 = vmatprep.subr.mxu0 0.0
  %2129 = vmatpush1.msra.mxu0 0.0
  %2130 = vmatprep.subr.mxu0 0.0
  %2131 = vmatpush1.msra.mxu0 0.0
  %2132 = vmatprep.subr.mxu0 0.0
  %2133 = vmatpush1.msra.mxu0 0.0
  %2134 = vmatprep.subr.mxu0 0.0
  %2135 = vmatpush1.msra.mxu0 0.0
  %2136 = vmatprep.subr.mxu0 0.0
  %2137 = vmatpush1.msra.mxu0 0.0
  %2138 = vmatprep.subr.mxu0 0.0
  %2139 = vmatpush1.msra.mxu0 0.0
  %2140 = vmatprep.subr.mxu0 0.0
  %2141 = vmatpush1.msra.mxu0 0.0
  %2142 = vmatprep.subr.mxu0 0.0
  %2143 = vmatpush1.msra.mxu0 0.0
  %2144 = vmatprep.subr.mxu0 0.0
  %2145 = vmatpush1.msra.mxu0 0.0
  %2146 = vmatprep.subr.mxu0 0.0
  %2147 = vmatpush1.msra.mxu0 0.0
  %2148 = vmatprep.subr.mxu0 0.0
  %2149 = vmatpush1.msra.mxu0 0.0
  %2150 = vmatprep.subr.mxu0 0.0
  %2151 = vmatpush1.msra.mxu0 0.0
  %2152 = vmatprep.subr.mxu0 0.0
  %2153 = vmatpush1.msra.mxu0 0.0
  %2154 = vmatprep.subr.mxu0 0.0
  %2155 = vmatpush1.msra.mxu0 0.0
  %2156 = vmatprep.subr.mxu0 0.0
  %2157 = vmatpush1.msra.mxu0 0.0
  %2158 = vmatprep.subr.mxu0 0.0
  %2159 = vmatpush1.msra.mxu0 0.0
  %2160 = vmatprep.subr.mxu0 0.0
  %2161 = vmatpush1.msra.mxu0 0.0
  %2162 = vmatprep.subr.mxu0 0.0
  %2163 = vmatpush1.msra.mxu0 0.0
  %2164 = vmatprep.subr.mxu0 0.0
  %2165 = vmatpush1.msra.mxu0 0.0
  %2166 = vmatprep.subr.mxu0 0.0
  %2167 = vmatpush1.msra.mxu0 0.0
  %2168 = vmatprep.subr.mxu0 0.0
  %2169 = vmatpush1.msra.mxu0 0.0
  %2170 = vmatprep.subr.mxu0 0.0
  %2171 = vmatpush1.msra.mxu0 0.0
  %2172 = vmatprep.subr.mxu0 0.0
  %2173 = vmatpush1.msra.mxu0 0.0
  %2174 = vmatprep.subr.mxu0 0.0
  %2175 = vmatpush1.msra.mxu0 0.0
  %2176 = vmatprep.subr.mxu0 0.0
  %2177 = vmatpush1.msra.mxu0 0.0
  %2178 = vmatprep.mubr.f32.mxu0 0.0
  %2179 = vmatmul.mubr.f32.gmra.mrb[0].mxu0 %v2112
  %v2180 = vpop.f32.mrb[0].mxu0
  %v2181 = vadd.f32 %v1640, %v2180
  %v2182 = vpop.f32.mrb[0].mxu0
  %2183 = vdwg.mxu0
  %v2185 = vsel %vm32, %v1536, 0
  %2187 = vmatprep.subr.mxu0 0.0
  %2188 = vmatpush1.msra.mxu0 %v1569
  %2189 = vmatprep.subr.mxu0 0.0
  %2190 = vmatpush1.msra.mxu0 %v1570
  %2191 = vmatprep.subr.mxu0 0.0
  %2192 = vmatpush1.msra.mxu0 %v1571
  %2193 = vmatprep.subr.mxu0 0.0
  %2194 = vmatpush1.msra.mxu0 %v1572
  %2195 = vmatprep.subr.mxu0 0.0
  %2196 = vmatpush1.msra.mxu0 0.0
  %2197 = vmatprep.subr.mxu0 0.0
  %2198 = vmatpush1.msra.mxu0 0.0
  %2199 = vmatprep.subr.mxu0 0.0
  %2200 = vmatpush1.msra.mxu0 0.0
  %2201 = vmatprep.subr.mxu0 0.0
  %2202 = vmatpush1.msra.mxu0 0.0
  %2203 = vmatprep.subr.mxu0 0.0
  %2204 = vmatpush1.msra.mxu0 0.0
  %2205 = vmatprep.subr.mxu0 0.0
  %2206 = vmatpush1.msra.mxu0 0.0
  %2207 = vmatprep.subr.mxu0 0.0
  %2208 = vmatpush1.msra.mxu0 0.0
  %2209 = vmatprep.subr.mxu0 0.0
  %2210 = vmatpush1.msra.mxu0 0.0
  %2211 = vmatprep.subr.mxu0 0.0
  %2212 = vmatpush1.msra.mxu0 0.0
  %2213 = vmatprep.subr.mxu0 0.0
  %2214 = vmatpush1.msra.mxu0 0.0
  %2215 = vmatprep.subr.mxu0 0.0
  %2216 = vmatpush1.msra.mxu0 0.0
  %2217 = vmatprep.subr.mxu0 0.0
  %2218 = vmatpush1.msra.mxu0 0.0
  %2219 = vmatprep.subr.mxu0 0.0
  %2220 = vmatpush1.msra.mxu0 0.0
  %2221 = vmatprep.subr.mxu0 0.0
  %2222 = vmatpush1.msra.mxu0 0.0
  %2223 = vmatprep.subr.mxu0 0.0
  %2224 = vmatpush1.msra.mxu0 0.0
  %2225 = vmatprep.subr.mxu0 0.0
  %2226 = vmatpush1.msra.mxu0 0.0
  %2227 = vmatprep.subr.mxu0 0.0
  %2228 = vmatpush1.msra.mxu0 0.0
  %2229 = vmatprep.subr.mxu0 0.0
  %2230 = vmatpush1.msra.mxu0 0.0
  %2231 = vmatprep.subr.mxu0 0.0
  %2232 = vmatpush1.msra.mxu0 0.0
  %2233 = vmatprep.subr.mxu0 0.0
  %2234 = vmatpush1.msra.mxu0 0.0
  %2235 = vmatprep.subr.mxu0 0.0
  %2236 = vmatpush1.msra.mxu0 0.0
  %2237 = vmatprep.subr.mxu0 0.0
  %2238 = vmatpush1.msra.mxu0 0.0
  %2239 = vmatprep.subr.mxu0 0.0
  %2240 = vmatpush1.msra.mxu0 0.0
  %2241 = vmatprep.subr.mxu0 0.0
  %2242 = vmatpush1.msra.mxu0 0.0
  %2243 = vmatprep.subr.mxu0 0.0
  %2244 = vmatpush1.msra.mxu0 0.0
  %2245 = vmatprep.subr.mxu0 0.0
  %2246 = vmatpush1.msra.mxu0 0.0
  %2247 = vmatprep.subr.mxu0 0.0
  %2248 = vmatpush1.msra.mxu0 0.0
  %2249 = vmatprep.subr.mxu0 0.0
  %2250 = vmatpush1.msra.mxu0 0.0
  %2251 = vmatprep.mubr.f32.mxu0 0.0
  %2252 = vmatmul.mubr.f32.gmra.mrb[0].mxu0 %v2185
  %v2253 = vpop.f32.mrb[0].mxu0
  %v2254 = vadd.f32 %v1644, %v2253
  %v2255 = vpop.f32.mrb[0].mxu0
  %2256 = vdwg.mxu0
  %v2258 = vsel %vm32, %v1537, 0
  %2260 = vmatprep.subr.mxu0 0.0
  %2261 = vmatpush1.msra.mxu0 %v1573
  %2262 = vmatprep.subr.mxu0 0.0
  %2263 = vmatpush1.msra.mxu0 %v1574
  %2264 = vmatprep.subr.mxu0 0.0
  %2265 = vmatpush1.msra.mxu0 %v1575
  %2266 = vmatprep.subr.mxu0 0.0
  %2267 = vmatpush1.msra.mxu0 %v1576
  %2268 = vmatprep.subr.mxu0 0.0
  %2269 = vmatpush1.msra.mxu0 0.0
  %2270 = vmatprep.subr.mxu0 0.0
  %2271 = vmatpush1.msra.mxu0 0.0
  %2272 = vmatprep.subr.mxu0 0.0
  %2273 = vmatpush1.msra.mxu0 0.0
  %2274 = vmatprep.subr.mxu0 0.0
  %2275 = vmatpush1.msra.mxu0 0.0
  %2276 = vmatprep.subr.mxu0 0.0
  %2277 = vmatpush1.msra.mxu0 0.0
  %2278 = vmatprep.subr.mxu0 0.0
  %2279 = vmatpush1.msra.mxu0 0.0
  %2280 = vmatprep.subr.mxu0 0.0
  %2281 = vmatpush1.msra.mxu0 0.0
  %2282 = vmatprep.subr.mxu0 0.0
  %2283 = vmatpush1.msra.mxu0 0.0
  %2284 = vmatprep.subr.mxu0 0.0
  %2285 = vmatpush1.msra.mxu0 0.0
  %2286 = vmatprep.subr.mxu0 0.0
  %2287 = vmatpush1.msra.mxu0 0.0
  %2288 = vmatprep.subr.mxu0 0.0
  %2289 = vmatpush1.msra.mxu0 0.0
  %2290 = vmatprep.subr.mxu0 0.0
  %2291 = vmatpush1.msra.mxu0 0.0
  %2292 = vmatprep.subr.mxu0 0.0
  %2293 = vmatpush1.msra.mxu0 0.0
  %2294 = vmatprep.subr.mxu0 0.0
  %2295 = vmatpush1.msra.mxu0 0.0
  %2296 = vmatprep.subr.mxu0 0.0
  %2297 = vmatpush1.msra.mxu0 0.0
  %2298 = vmatprep.subr.mxu0 0.0
  %2299 = vmatpush1.msra.mxu0 0.0
  %2300 = vmatprep.subr.mxu0 0.0
  %2301 = vmatpush1.msra.mxu0 0.0
  %2302 = vmatprep.subr.mxu0 0.0
  %2303 = vmatpush1.msra.mxu0 0.0
  %2304 = vmatprep.subr.mxu0 0.0
  %2305 = vmatpush1.msra.mxu0 0.0
  %2306 = vmatprep.subr.mxu0 0.0
  %2307 = vmatpush1.msra.mxu0 0.0
  %2308 = vmatprep.subr.mxu0 0.0
  %2309 = vmatpush1.msra.mxu0 0.0
  %2310 = vmatprep.subr.mxu0 0.0
  %2311 = vmatpush1.msra.mxu0 0.0
  %2312 = vmatprep.subr.mxu0 0.0
  %2313 = vmatpush1.msra.mxu0 0.0
  %2314 = vmatprep.subr.mxu0 0.0
  %2315 = vmatpush1.msra.mxu0 0.0
  %2316 = vmatprep.subr.mxu0 0.0
  %2317 = vmatpush1.msra.mxu0 0.0
  %2318 = vmatprep.subr.mxu0 0.0
  %2319 = vmatpush1.msra.mxu0 0.0
  %2320 = vmatprep.subr.mxu0 0.0
  %2321 = vmatpush1.msra.mxu0 0.0
  %2322 = vmatprep.subr.mxu0 0.0
  %2323 = vmatpush1.msra.mxu0 0.0
  %2324 = vmatprep.mubr.f32.mxu0 0.0
  %2325 = vmatmul.mubr.f32.gmra.mrb[0].mxu0 %v2258
  %v2326 = vpop.f32.mrb[0].mxu0
  %v2327 = vadd.f32 %v1648, %v2326
  %v2328 = vpop.f32.mrb[0].mxu0
  %2329 = vdwg.mxu0
  %v2331 = vsel %vm32, %v1538, 0
  %2333 = vmatprep.subr.mxu0 0.0
  %2334 = vmatpush1.msra.mxu0 %v1577
  %2335 = vmatprep.subr.mxu0 0.0
  %2336 = vmatpush1.msra.mxu0 %v1578
  %2337 = vmatprep.subr.mxu0 0.0
  %2338 = vmatpush1.msra.mxu0 %v1579
  %2339 = vmatprep.subr.mxu0 0.0
  %2340 = vmatpush1.msra.mxu0 %v1580
  %2341 = vmatprep.subr.mxu0 0.0
  %2342 = vmatpush1.msra.mxu0 0.0
  %2343 = vmatprep.subr.mxu0 0.0
  %2344 = vmatpush1.msra.mxu0 0.0
  %2345 = vmatprep.subr.mxu0 0.0
  %2346 = vmatpush1.msra.mxu0 0.0
  %2347 = vmatprep.subr.mxu0 0.0
  %2348 = vmatpush1.msra.mxu0 0.0
  %2349 = vmatprep.subr.mxu0 0.0
  %2350 = vmatpush1.msra.mxu0 0.0
  %2351 = vmatprep.subr.mxu0 0.0
  %2352 = vmatpush1.msra.mxu0 0.0
  %2353 = vmatprep.subr.mxu0 0.0
  %2354 = vmatpush1.msra.mxu0 0.0
  %2355 = vmatprep.subr.mxu0 0.0
  %2356 = vmatpush1.msra.mxu0 0.0
  %2357 = vmatprep.subr.mxu0 0.0
  %2358 = vmatpush1.msra.mxu0 0.0
  %2359 = vmatprep.subr.mxu0 0.0
  %2360 = vmatpush1.msra.mxu0 0.0
  %2361 = vmatprep.subr.mxu0 0.0
  %2362 = vmatpush1.msra.mxu0 0.0
  %2363 = vmatprep.subr.mxu0 0.0
  %2364 = vmatpush1.msra.mxu0 0.0
  %2365 = vmatprep.subr.mxu0 0.0
  %2366 = vmatpush1.msra.mxu0 0.0
  %2367 = vmatprep.subr.mxu0 0.0
  %2368 = vmatpush1.msra.mxu0 0.0
  %2369 = vmatprep.subr.mxu0 0.0
  %2370 = vmatpush1.msra.mxu0 0.0
  %2371 = vmatprep.subr.mxu0 0.0
  %2372 = vmatpush1.msra.mxu0 0.0
  %2373 = vmatprep.subr.mxu0 0.0
  %2374 = vmatpush1.msra.mxu0 0.0
  %2375 = vmatprep.subr.mxu0 0.0
  %2376 = vmatpush1.msra.mxu0 0.0
  %2377 = vmatprep.subr.mxu0 0.0
  %2378 = vmatpush1.msra.mxu0 0.0
  %2379 = vmatprep.subr.mxu0 0.0
  %2380 = vmatpush1.msra.mxu0 0.0
  %2381 = vmatprep.subr.mxu0 0.0
  %2382 = vmatpush1.msra.mxu0 0.0
  %2383 = vmatprep.subr.mxu0 0.0
  %2384 = vmatpush1.msra.mxu0 0.0
  %2385 = vmatprep.subr.mxu0 0.0
  %2386 = vmatpush1.msra.mxu0 0.0
  %2387 = vmatprep.subr.mxu0 0.0
  %2388 = vmatpush1.msra.mxu0 0.0
  %2389 = vmatprep.subr.mxu0 0.0
  %2390 = vmatpush1.msra.mxu0 0.0
  %2391 = vmatprep.subr.mxu0 0.0
  %2392 = vmatpush1.msra.mxu0 0.0
  %2393 = vmatprep.subr.mxu0 0.0
  %2394 = vmatpush1.msra.mxu0 0.0
  %2395 = vmatprep.subr.mxu0 0.0
  %2396 = vmatpush1.msra.mxu0 0.0
  %2397 = vmatprep.mubr.f32.mxu0 0.0
  %2398 = vmatmul.mubr.f32.gmra.mrb[0].mxu0 %v2331
  %v2399 = vpop.f32.mrb[0].mxu0
  %v2400 = vadd.f32 %v1652, %v2399
  %v2401 = vpop.f32.mrb[0].mxu0
  %2402 = vdwg.mxu0
  %v2404 = vsel %vm32, %v1539, 0
  %2406 = vmatprep.subr.mxu0 0.0
  %2407 = vmatpush1.msra.mxu0 %v1581
  %2408 = vmatprep.subr.mxu0 0.0
  %2409 = vmatpush1.msra.mxu0 %v1582
  %2410 = vmatprep.subr.mxu0 0.0
  %2411 = vmatpush1.msra.mxu0 %v1583
  %2412 = vmatprep.subr.mxu0 0.0
  %2413 = vmatpush1.msra.mxu0 %v1584
  %2414 = vmatprep.subr.mxu0 0.0
  %2415 = vmatpush1.msra.mxu0 0.0
  %2416 = vmatprep.subr.mxu0 0.0
  %2417 = vmatpush1.msra.mxu0 0.0
  %2418 = vmatprep.subr.mxu0 0.0
  %2419 = vmatpush1.msra.mxu0 0.0
  %2420 = vmatprep.subr.mxu0 0.0
  %2421 = vmatpush1.msra.mxu0 0.0
  %2422 = vmatprep.subr.mxu0 0.0
  %2423 = vmatpush1.msra.mxu0 0.0
  %2424 = vmatprep.subr.mxu0 0.0
  %2425 = vmatpush1.msra.mxu0 0.0
  %2426 = vmatprep.subr.mxu0 0.0
  %2427 = vmatpush1.msra.mxu0 0.0
  %2428 = vmatprep.subr.mxu0 0.0
  %2429 = vmatpush1.msra.mxu0 0.0
  %2430 = vmatprep.subr.mxu0 0.0
  %2431 = vmatpush1.msra.mxu0 0.0
  %2432 = vmatprep.subr.mxu0 0.0
  %2433 = vmatpush1.msra.mxu0 0.0
  %2434 = vmatprep.subr.mxu0 0.0
  %2435 = vmatpush1.msra.mxu0 0.0
  %2436 = vmatprep.subr.mxu0 0.0
  %2437 = vmatpush1.msra.mxu0 0.0
  %2438 = vmatprep.subr.mxu0 0.0
  %2439 = vmatpush1.msra.mxu0 0.0
  %2440 = vmatprep.subr.mxu0 0.0
  %2441 = vmatpush1.msra.mxu0 0.0
  %2442 = vmatprep.subr.mxu0 0.0
  %2443 = vmatpush1.msra.mxu0 0.0
  %2444 = vmatprep.subr.mxu0 0.0
  %2445 = vmatpush1.msra.mxu0 0.0
  %2446 = vmatprep.subr.mxu0 0.0
  %2447 = vmatpush1.msra.mxu0 0.0
  %2448 = vmatprep.subr.mxu0 0.0
  %2449 = vmatpush1.msra.mxu0 0.0
  %2450 = vmatprep.subr.mxu0 0.0
  %2451 = vmatpush1.msra.mxu0 0.0
  %2452 = vmatprep.subr.mxu0 0.0
  %2453 = vmatpush1.msra.mxu0 0.0
  %2454 = vmatprep.subr.mxu0 0.0
  %2455 = vmatpush1.msra.mxu0 0.0
  %2456 = vmatprep.subr.mxu0 0.0
  %2457 = vmatpush1.msra.mxu0 0.0
  %2458 = vmatprep.subr.mxu0 0.0
  %2459 = vmatpush1.msra.mxu0 0.0
  %2460 = vmatprep.subr.mxu0 0.0
  %2461 = vmatpush1.msra.mxu0 0.0
  %2462 = vmatprep.subr.mxu0 0.0
  %2463 = vmatpush1.msra.mxu0 0.0
  %2464 = vmatprep.subr.mxu0 0.0
  %2465 = vmatpush1.msra.mxu0 0.0
  %2466 = vmatprep.subr.mxu0 0.0
  %2467 = vmatpush1.msra.mxu0 0.0
  %2468 = vmatprep.subr.mxu0 0.0
  %2469 = vmatpush1.msra.mxu0 0.0
  %2470 = vmatprep.mubr.f32.mxu0 0.0
  %2471 = vmatmul.mubr.f32.gmra.mrb[0].mxu0 %v2404
  %v2472 = vpop.f32.mrb[0].mxu0
  %v2473 = vadd.f32 %v1656, %v2472
  %v2474 = vpop.f32.mrb[0].mxu0
  %2475 = vdwg.mxu0
  %v2477 = vsel %vm32, %v1540, 0
  %2479 = vmatprep.subr.mxu0 0.0
  %2480 = vmatpush1.msra.mxu0 %v1585
  %2481 = vmatprep.subr.mxu0 0.0
  %2482 = vmatpush1.msra.mxu0 %v1586
  %2483 = vmatprep.subr.mxu0 0.0
  %2484 = vmatpush1.msra.mxu0 %v1587
  %2485 = vmatprep.subr.mxu0 0.0
  %2486 = vmatpush1.msra.mxu0 %v1588
  %2487 = vmatprep.subr.mxu0 0.0
  %2488 = vmatpush1.msra.mxu0 0.0
  %2489 = vmatprep.subr.mxu0 0.0
  %2490 = vmatpush1.msra.mxu0 0.0
  %2491 = vmatprep.subr.mxu0 0.0
  %2492 = vmatpush1.msra.mxu0 0.0
  %2493 = vmatprep.subr.mxu0 0.0
  %2494 = vmatpush1.msra.mxu0 0.0
  %2495 = vmatprep.subr.mxu0 0.0
  %2496 = vmatpush1.msra.mxu0 0.0
  %2497 = vmatprep.subr.mxu0 0.0
  %2498 = vmatpush1.msra.mxu0 0.0
  %2499 = vmatprep.subr.mxu0 0.0
  %2500 = vmatpush1.msra.mxu0 0.0
  %2501 = vmatprep.subr.mxu0 0.0
  %2502 = vmatpush1.msra.mxu0 0.0
  %2503 = vmatprep.subr.mxu0 0.0
  %2504 = vmatpush1.msra.mxu0 0.0
  %2505 = vmatprep.subr.mxu0 0.0
  %2506 = vmatpush1.msra.mxu0 0.0
  %2507 = vmatprep.subr.mxu0 0.0
  %2508 = vmatpush1.msra.mxu0 0.0
  %2509 = vmatprep.subr.mxu0 0.0
  %2510 = vmatpush1.msra.mxu0 0.0
  %2511 = vmatprep.subr.mxu0 0.0
  %2512 = vmatpush1.msra.mxu0 0.0
  %2513 = vmatprep.subr.mxu0 0.0
  %2514 = vmatpush1.msra.mxu0 0.0
  %2515 = vmatprep.subr.mxu0 0.0
  %2516 = vmatpush1.msra.mxu0 0.0
  %2517 = vmatprep.subr.mxu0 0.0
  %2518 = vmatpush1.msra.mxu0 0.0
  %2519 = vmatprep.subr.mxu0 0.0
  %2520 = vmatpush1.msra.mxu0 0.0
  %2521 = vmatprep.subr.mxu0 0.0
  %2522 = vmatpush1.msra.mxu0 0.0
  %2523 = vmatprep.subr.mxu0 0.0
  %2524 = vmatpush1.msra.mxu0 0.0
  %2525 = vmatprep.subr.mxu0 0.0
  %2526 = vmatpush1.msra.mxu0 0.0
  %2527 = vmatprep.subr.mxu0 0.0
  %2528 = vmatpush1.msra.mxu0 0.0
  %2529 = vmatprep.subr.mxu0 0.0
  %2530 = vmatpush1.msra.mxu0 0.0
  %2531 = vmatprep.subr.mxu0 0.0
  %2532 = vmatpush1.msra.mxu0 0.0
  %2533 = vmatprep.subr.mxu0 0.0
  %2534 = vmatpush1.msra.mxu0 0.0
  %2535 = vmatprep.subr.mxu0 0.0
  %2536 = vmatpush1.msra.mxu0 0.0
  %2537 = vmatprep.subr.mxu0 0.0
  %2538 = vmatpush1.msra.mxu0 0.0
  %2539 = vmatprep.subr.mxu0 0.0
  %2540 = vmatpush1.msra.mxu0 0.0
  %2541 = vmatprep.subr.mxu0 0.0
  %2542 = vmatpush1.msra.mxu0 0.0
  %2543 = vmatprep.mubr.f32.mxu0 0.0
  %2544 = vmatmul.mubr.f32.gmra.mrb[0].mxu0 %v2477
  %v2545 = vpop.f32.mrb[0].mxu0
  %v2546 = vadd.f32 %v1660, %v2545
  %v2547 = vpop.f32.mrb[0].mxu0
  %2548 = vdwg.mxu0
  %vm2549 = vcmask 17408
  %2550 = vst.msk [vmem:[%s7] sm:$0x3] %vm2549, %v1743
  %2551 = vst.msk [vmem:[%s7 + $0x2] sm:$0x3] %vm2549, %v1816
  %2552 = vst.msk [vmem:[%s7 + $0x4] sm:$0x3] %vm2549, %v1889
  %2553 = vst.msk [vmem:[%s7 + $0x6] sm:$0x3] %vm2549, %v1962
  %2554 = vst.msk [vmem:[%s7 + $0x8] sm:$0x3] %vm2549, %v2035
  %2555 = vst.msk [vmem:[%s7 + $0xa] sm:$0x3] %vm2549, %v2108
  %2556 = vst.msk [vmem:[%s7 + $0xc] sm:$0x3] %vm2549, %v2181
  %2557 = vst.msk [vmem:[%s7 + $0xe] sm:$0x3] %vm2549, %v2254
  %2558 = vst.msk [vmem:[%s7 + $0x10] sm:$0x3] %vm2549, %v2327
  %2559 = vst.msk [vmem:[%s7 + $0x12] sm:$0x3] %vm2549, %v2400
  %2560 = vst.msk [vmem:[%s7 + $0x14] sm:$0x3] %vm2549, %v2473
  %2561 = vst.msk [vmem:[%s7 + $0x16] sm:$0x3] %vm2549, %v2546
  // Predicated region
  $region30: #{tpu_custom_call.1} parent=0 // pred_check
    _
  $region31: #{tpu_custom_call.1} parent=0 // pred_check_branch
    %2563 = sbr.rel (0) target = $region33
  $region32: #{tpu_custom_call.1} parent=0 // pred_region
    _
  $region33: #{tpu_custom_call.1} parent=0 // pred_fallthru
    _
  // Predicated region
  $region34: #{tpu_custom_call.1} parent=0 // pred_check
    _
  $region35: #{tpu_custom_call.1} parent=0 // pred_check_branch
    %2565 = sbr.rel (0) target = $region37
  $region36: #{tpu_custom_call.1} parent=0 // pred_region
    _
  $region37: #{tpu_custom_call.1} parent=0 // pred_fallthru
    _

</llo_original>
